<compile_context>
chip_gen: v7x
topology: tpu7x:2x2x1
jax: 0.10.0
libtpu: 0.0.40
codegen_flags: <defaults>
</compile_context>

<pallas_src>
import functools

import jax
import jax.numpy as jnp
from jax.experimental import pallas as pl
from jax.experimental.pallas import tpu as pltpu


def _transformer_block_kernel(
    x_ref,            # (1, T, E)  f32
    wqkv_ref,         # (E, 3E)    bf16  fused [Wq.T*s | Wk.T*s | Wv.T]
    wu_ref,           # (H, s, E)  bf16  unify-heads weight, per-head, pre-transposed
    bu_ref,           # (1, E)     f32
    g1_ref, be1_ref,  # (1, E)     f32   LayerNorm1 gamma/beta
    w1_ref,           # (E, F)     bf16  FF first linear (pre-transposed)
    bf1_ref,          # (1, F)     f32
    w2_ref,           # (F, E)     bf16  FF second linear (pre-transposed)
    bf2_ref,          # (1, E)     f32
    g2_ref, be2_ref,  # (1, E)     f32   LayerNorm2 gamma/beta
    o_ref,            # (1, T, E)  f32
    *, heads: int, mask: bool,
):
    f32 = jnp.float32
    bf16 = jnp.bfloat16

    x = x_ref[0]                     # (T, E) f32 — kept f32 for residual / LN
    T, E = x.shape
    s = E // heads
    eps = f32(1e-5)

    # --- fused q/k/v projection: one MXU pass, scale folded into weights ----
    x_bf = x.astype(bf16)
    qkv = jnp.dot(x_bf, wqkv_ref[...], preferred_element_type=f32)   # (T, 3E)
    qkv_bf = qkv.astype(bf16)

    # --- split to batched per-head operands (H, T, s) -----------------------
    def to_heads(mat):               # (T, E) -> (H, T, s)
        return jnp.concatenate(
            [mat[None, :, h * s:(h + 1) * s] for h in range(heads)], axis=0)

    q_h = to_heads(qkv_bf[:, :E])
    k_h = to_heads(qkv_bf[:, E:2 * E])
    v_h = to_heads(qkv_bf[:, 2 * E:])

    # --- batched attention for all heads at once ----------------------------
    scores = jnp.einsum("htd,hud->htu", q_h, k_h,
                        preferred_element_type=f32)          # (H, T, T) f32
    if mask:
        # mask_(dot, -inf, mask_diagonal=False): -inf where col > row,
        # built once and broadcast over all heads.
        row = jax.lax.broadcasted_iota(jnp.int32, (T, T), 0)
        col = jax.lax.broadcasted_iota(jnp.int32, (T, T), 1)
        scores = jnp.where(col > row, -jnp.inf, scores)

    m = jnp.max(scores, axis=-1, keepdims=True)
    p = jnp.exp(scores - m)                                   # unnormalized
    denom = jnp.sum(p, axis=-1, keepdims=True)                # (H, T, 1)

    out_h = jnp.einsum("htu,hud->htd", p.astype(bf16), v_h,
                       preferred_element_type=f32)            # (H, T, s)
    # deferred softmax normalization on (T, s) instead of (T, T); EUP reciprocal
    out_h = out_h * pl.reciprocal(denom, approx=True)

    # --- unify heads: batched (H,T,s)x(H,s,E), reduce over heads (no concat) -
    attended = jnp.einsum("htd,hde->hte", out_h.astype(bf16), wu_ref[...],
                          preferred_element_type=f32).sum(axis=0) + bu_ref[...]

    # --- residual + LayerNorm1 (f32) -----------------------------------------
    y = attended + x
    mu = jnp.mean(y, axis=-1, keepdims=True)
    var = jnp.mean((y - mu) ** 2, axis=-1, keepdims=True)
    y = (y - mu) * jax.lax.rsqrt(var + eps) * g1_ref[...] + be1_ref[...]
    # dropout = identity (eval mode)  TODO(synk): train-mode dropout not implemented

    # --- feed-forward: Linear -> ReLU -> Linear (bf16 matmuls, f32 accum) ----
    h1 = jnp.dot(y.astype(bf16), w1_ref[...],
                 preferred_element_type=f32) + bf1_ref[...]
    h1 = jnp.maximum(h1, 0.0)
    ff = jnp.dot(h1.astype(bf16), w2_ref[...],
                 preferred_element_type=f32) + bf2_ref[...]

    # --- residual + LayerNorm2 -----------------------------------------------
    z = ff + y
    mu2 = jnp.mean(z, axis=-1, keepdims=True)
    var2 = jnp.mean((z - mu2) ** 2, axis=-1, keepdims=True)
    z = (z - mu2) * jax.lax.rsqrt(var2 + eps) * g2_ref[...] + be2_ref[...]

    o_ref[0] = z


def transformer_block(x, params, *, heads: int, mask: bool = False):
    """x: (B, T, E) float32. params in PyTorch layout. Returns (B, T, E) f32."""
    B, T, E = x.shape
    assert E % heads == 0, "embedding dim must be divisible by heads"
    s = E // heads
    F = params["w1"].shape[0]
    f32, bf16 = jnp.float32, jnp.bfloat16

    # Host-side (trace-time) weight prep: transpose, fuse, fold the attention
    # scale, cast to bf16. Done once per call; in production cache these.
    inv_scale = 1.0 / (float(E) ** 0.25)
    wqkv = jnp.concatenate(
        [params["wq"].T * inv_scale,
         params["wk"].T * inv_scale,
         params["wv"].T], axis=1).astype(bf16)                  # (E, 3E)
    wu_heads = params["wu"].T.reshape(heads, s, E).astype(bf16)  # (H, s, E)
    w1_t = params["w1"].T.astype(bf16)                           # (E, F)
    w2_t = params["w2"].T.astype(bf16)                           # (F, E)

    full = lambda shp: pl.BlockSpec(shp, lambda b: (0,) * len(shp))
    # NOTE: at production sizes give these constant-index weight specs
    # pipeline_mode=pl.Buffered(1) to single-buffer them in VMEM.
    in_specs = [
        pl.BlockSpec((1, T, E), lambda b: (b, 0, 0)),   # x
        full((E, 3 * E)),                               # fused qkv weight
        full((heads, s, E)), full((1, E)),              # unify-heads W, b
        full((1, E)), full((1, E)),                     # LN1 gamma, beta
        full((E, F)), full((1, F)),                     # FF W1, b1
        full((F, E)), full((1, E)),                     # FF W2, b2
        full((1, E)), full((1, E)),                     # LN2 gamma, beta
    ]

    kernel = functools.partial(_transformer_block_kernel, heads=heads, mask=mask)

    return pl.pallas_call(
        kernel,
        out_shape=jax.ShapeDtypeStruct((B, T, E), f32),
        grid_spec=pltpu.PrefetchScalarGridSpec(
            num_scalar_prefetch=0,
            grid=(B,),
            in_specs=in_specs,
            out_specs=pl.BlockSpec((1, T, E), lambda b: (b, 0, 0)),
        ),
        compiler_params=pltpu.CompilerParams(
            dimension_semantics=("parallel",),
            vmem_limit_bytes=48 * 1024 * 1024,
        ),
    )(x.astype(f32), wqkv, wu_heads,
      params["bu"].astype(f32),
      params["g1"].astype(f32), params["be1"].astype(f32),
      w1_t, params["bf1"].astype(f32),
      w2_t, params["bf2"].astype(f32),
      params["g2"].astype(f32), params["be2"].astype(f32))


# ---------------------------------------------------------------------------
# pure-JAX f32 reference (mirrors the PyTorch forward exactly) for verification
# ---------------------------------------------------------------------------
def transformer_block_ref(x, p, *, heads: int, mask: bool = False):
    B, T, E = x.shape
    s = E // heads
    scale = E ** 0.25

    k = (x @ p["wk"].T).reshape(B, T, heads, s).transpose(0, 2, 1, 3) / scale
    q = (x @ p["wq"].T).reshape(B, T, heads, s).transpose(0, 2, 1, 3) / scale
    v = (x @ p["wv"].T).reshape(B, T, heads, s).transpose(0, 2, 1, 3)
    dot = jnp.einsum("bhqs,bhks->bhqk", q, k)
    if mask:
        row = jnp.arange(T)[:, None]
        col = jnp.arange(T)[None, :]
        dot = jnp.where(col > row, -jnp.inf, dot)
    dot = jax.nn.softmax(dot, axis=-1)
    out = jnp.einsum("bhqk,bhks->bhqs", dot, v).transpose(0, 2, 1, 3).reshape(B, T, E)
    attended = out @ p["wu"].T + p["bu"][0]

    def ln(z, g, b):
        mu = jnp.mean(z, axis=-1, keepdims=True)
        var = jnp.mean((z - mu) ** 2, axis=-1, keepdims=True)
        return (z - mu) / jnp.sqrt(var + 1e-5) * g[0] + b[0]

    y = ln(attended + x, p["g1"], p["be1"])
    ff = jnp.maximum(y @ p["w1"].T + p["bf1"][0], 0.0) @ p["w2"].T + p["bf2"][0]
    return ln(ff + y, p["g2"], p["be2"])


if __name__ == "__main__":
    B, T, E, H = 2, 8, 32, 4
    FF_MULT = 4
    F = FF_MULT * E

    key = jax.random.PRNGKey(0)
    keys = jax.random.split(key, 8)

    x = jax.random.normal(keys[0], (B, T, E), dtype=jnp.float32)

    w = lambda k, shp: (0.02 * jax.random.normal(k, shp)).astype(jnp.float32)
    params = {
        "wk": w(keys[1], (E, E)),
        "wq": w(keys[2], (E, E)),
        "wv": w(keys[3], (E, E)),
        "wu": w(keys[4], (E, E)),
        "bu": jnp.zeros((1, E), jnp.float32),
        "g1": jnp.ones((1, E), jnp.float32),
        "be1": jnp.zeros((1, E), jnp.float32),
        "w1": w(keys[5], (F, E)),
        "bf1": jnp.zeros((1, F), jnp.float32),
        "w2": w(keys[6], (E, F)),
        "bf2": jnp.zeros((1, E), jnp.float32),
        "g2": jnp.ones((1, E), jnp.float32),
        "be2": jnp.zeros((1, E), jnp.float32),
    }

    out = transformer_block(x, params, heads=H, mask=False)
    out = jax.block_until_ready(out)

    ref = transformer_block_ref(x, params, heads=H, mask=False)
    assert out.shape == (B, T, E)
    # bf16 matmuls + approx softmax reciprocal -> relaxed (but still tight) tol
    assert jnp.allclose(out, ref, rtol=2e-2, atol=2e-2), "mismatch vs reference"

    print("KERNEL_OK")
</pallas_src>

<mosaic_0001>
module attributes {stable_mosaic.version = 11 : i64} {
  func.func @_transformer_block_kernel(%arg0: i32, %arg1: memref<1x8x32xf32, #tpu.memory_space<vmem>>, %arg2: memref<32x96xbf16, #tpu.memory_space<vmem>>, %arg3: memref<4x8x32xbf16, #tpu.memory_space<vmem>>, %arg4: memref<1x32xf32, #tpu.memory_space<vmem>>, %arg5: memref<1x32xf32, #tpu.memory_space<vmem>>, %arg6: memref<1x32xf32, #tpu.memory_space<vmem>>, %arg7: memref<32x128xbf16, #tpu.memory_space<vmem>>, %arg8: memref<1x128xf32, #tpu.memory_space<vmem>>, %arg9: memref<128x32xbf16, #tpu.memory_space<vmem>>, %arg10: memref<1x32xf32, #tpu.memory_space<vmem>>, %arg11: memref<1x32xf32, #tpu.memory_space<vmem>>, %arg12: memref<1x32xf32, #tpu.memory_space<vmem>>, %arg13: memref<1x8x32xf32, #tpu.memory_space<vmem>>) attributes {dimension_semantics = [#tpu.dimension_semantics<parallel>], iteration_bounds = array<i64: 2>, scalar_prefetch = 0 : i64, scratch_operands = 0 : i64, tpu.core_type = #tpu.core_type<tc>, window_params = [{transform_indices = @transform_0, window_bounds = array<i64: 1, 8, 32>}, {pipeline_mode = #tpu.pipeline_mode<synchronous>, transform_indices = @transform_1, window_bounds = array<i64: 32, 96>}, {pipeline_mode = #tpu.pipeline_mode<synchronous>, transform_indices = @transform_2, window_bounds = array<i64: 4, 8, 32>}, {pipeline_mode = #tpu.pipeline_mode<synchronous>, transform_indices = @transform_3, window_bounds = array<i64: 1, 32>}, {pipeline_mode = #tpu.pipeline_mode<synchronous>, transform_indices = @transform_4, window_bounds = array<i64: 1, 32>}, {pipeline_mode = #tpu.pipeline_mode<synchronous>, transform_indices = @transform_5, window_bounds = array<i64: 1, 32>}, {pipeline_mode = #tpu.pipeline_mode<synchronous>, transform_indices = @transform_6, window_bounds = array<i64: 32, 128>}, {pipeline_mode = #tpu.pipeline_mode<synchronous>, transform_indices = @transform_7, window_bounds = array<i64: 1, 128>}, {pipeline_mode = #tpu.pipeline_mode<synchronous>, transform_indices = @transform_8, window_bounds = array<i64: 128, 32>}, {pipeline_mode = #tpu.pipeline_mode<synchronous>, transform_indices = @transform_9, window_bounds = array<i64: 1, 32>}, {pipeline_mode = #tpu.pipeline_mode<synchronous>, transform_indices = @transform_10, window_bounds = array<i64: 1, 32>}, {pipeline_mode = #tpu.pipeline_mode<synchronous>, transform_indices = @transform_11, window_bounds = array<i64: 1, 32>}, {transform_indices = @transform_12, window_bounds = array<i64: 1, 8, 32>}]} {
    %c0 = arith.constant 0 : index
    %c0_0 = arith.constant 0 : index
    %c0_1 = arith.constant 0 : index
    %0 = vector.load %arg1[%c0, %c0_0, %c0_1] : memref<1x8x32xf32, #tpu.memory_space<vmem>>, vector<1x8x32xf32>
    %1 = vector.shape_cast %0 : vector<1x8x32xf32> to vector<8x32xf32>
    %2 = arith.truncf %1 : vector<8x32xf32> to vector<8x32xbf16>
    %c0_2 = arith.constant 0 : index
    %c0_3 = arith.constant 0 : index
    %3 = vector.load %arg2[%c0_2, %c0_3] : memref<32x96xbf16, #tpu.memory_space<vmem>>, vector<32x96xbf16>
    %cst = arith.constant dense<0.000000e+00> : vector<8x96xf32>
    %4 = tpu.matmul %2, %3, %cst {dimension_numbers = #tpu.dot_dimension_numbers<[1], [0], [0], [1], [0, 0, 1, 1], [], []>} : vector<8x32xbf16>, vector<32x96xbf16>, vector<8x96xf32> -> vector<8x96xf32>
    %5 = arith.truncf %4 : vector<8x96xf32> to vector<8x96xbf16>
    %6 = vector.extract_strided_slice %5 {offsets = [0, 0], sizes = [8, 32], strides = [1, 1]} : vector<8x96xbf16> to vector<8x32xbf16>
    %7 = vector.extract_strided_slice %6 {offsets = [0, 0], sizes = [8, 8], strides = [1, 1]} : vector<8x32xbf16> to vector<8x8xbf16>
    %8 = vector.shape_cast %7 : vector<8x8xbf16> to vector<1x8x8xbf16>
    %9 = vector.extract_strided_slice %6 {offsets = [0, 8], sizes = [8, 8], strides = [1, 1]} : vector<8x32xbf16> to vector<8x8xbf16>
    %10 = vector.shape_cast %9 : vector<8x8xbf16> to vector<1x8x8xbf16>
    %11 = vector.extract_strided_slice %6 {offsets = [0, 16], sizes = [8, 8], strides = [1, 1]} : vector<8x32xbf16> to vector<8x8xbf16>
    %12 = vector.shape_cast %11 : vector<8x8xbf16> to vector<1x8x8xbf16>
    %13 = vector.extract_strided_slice %6 {offsets = [0, 24], sizes = [8, 8], strides = [1, 1]} : vector<8x32xbf16> to vector<8x8xbf16>
    %14 = vector.shape_cast %13 : vector<8x8xbf16> to vector<1x8x8xbf16>
    %15 = tpu.concatenate %8, %10, %12, %14 in 0 : vector<1x8x8xbf16>, vector<1x8x8xbf16>, vector<1x8x8xbf16>, vector<1x8x8xbf16> -> vector<4x8x8xbf16>
    %16 = vector.extract_strided_slice %5 {offsets = [0, 32], sizes = [8, 32], strides = [1, 1]} : vector<8x96xbf16> to vector<8x32xbf16>
    %17 = vector.extract_strided_slice %16 {offsets = [0, 0], sizes = [8, 8], strides = [1, 1]} : vector<8x32xbf16> to vector<8x8xbf16>
    %18 = vector.shape_cast %17 : vector<8x8xbf16> to vector<1x8x8xbf16>
    %19 = vector.extract_strided_slice %16 {offsets = [0, 8], sizes = [8, 8], strides = [1, 1]} : vector<8x32xbf16> to vector<8x8xbf16>
    %20 = vector.shape_cast %19 : vector<8x8xbf16> to vector<1x8x8xbf16>
    %21 = vector.extract_strided_slice %16 {offsets = [0, 16], sizes = [8, 8], strides = [1, 1]} : vector<8x32xbf16> to vector<8x8xbf16>
    %22 = vector.shape_cast %21 : vector<8x8xbf16> to vector<1x8x8xbf16>
    %23 = vector.extract_strided_slice %16 {offsets = [0, 24], sizes = [8, 8], strides = [1, 1]} : vector<8x32xbf16> to vector<8x8xbf16>
    %24 = vector.shape_cast %23 : vector<8x8xbf16> to vector<1x8x8xbf16>
    %25 = tpu.concatenate %18, %20, %22, %24 in 0 : vector<1x8x8xbf16>, vector<1x8x8xbf16>, vector<1x8x8xbf16>, vector<1x8x8xbf16> -> vector<4x8x8xbf16>
    %26 = vector.extract_strided_slice %5 {offsets = [0, 64], sizes = [8, 32], strides = [1, 1]} : vector<8x96xbf16> to vector<8x32xbf16>
    %27 = vector.extract_strided_slice %26 {offsets = [0, 0], sizes = [8, 8], strides = [1, 1]} : vector<8x32xbf16> to vector<8x8xbf16>
    %28 = vector.shape_cast %27 : vector<8x8xbf16> to vector<1x8x8xbf16>
    %29 = vector.extract_strided_slice %26 {offsets = [0, 8], sizes = [8, 8], strides = [1, 1]} : vector<8x32xbf16> to vector<8x8xbf16>
    %30 = vector.shape_cast %29 : vector<8x8xbf16> to vector<1x8x8xbf16>
    %31 = vector.extract_strided_slice %26 {offsets = [0, 16], sizes = [8, 8], strides = [1, 1]} : vector<8x32xbf16> to vector<8x8xbf16>
    %32 = vector.shape_cast %31 : vector<8x8xbf16> to vector<1x8x8xbf16>
    %33 = vector.extract_strided_slice %26 {offsets = [0, 24], sizes = [8, 8], strides = [1, 1]} : vector<8x32xbf16> to vector<8x8xbf16>
    %34 = vector.shape_cast %33 : vector<8x8xbf16> to vector<1x8x8xbf16>
    %35 = tpu.concatenate %28, %30, %32, %34 in 0 : vector<1x8x8xbf16>, vector<1x8x8xbf16>, vector<1x8x8xbf16>, vector<1x8x8xbf16> -> vector<4x8x8xbf16>
    "tpu.trace_start"() <{level = 10 : i32, message = "htd,hud->htu"}> : () -> ()
    %cst_4 = arith.constant dense<0.000000e+00> : vector<4x8x8xf32>
    %36 = tpu.matmul %15, %25, %cst_4 {dimension_numbers = #tpu.dot_dimension_numbers<[2], [2], [1], [1], [0, 0, 0, 1, 1, 1], [0], [0]>} : vector<4x8x8xbf16>, vector<4x8x8xbf16>, vector<4x8x8xf32> -> vector<4x8x8xf32>
    "tpu.trace_stop"() : () -> ()
    %cst_5 = arith.constant dense<0xFF800000> : vector<4x8xf32>
    %37 = vector.multi_reduction <maximumf>, %36, %cst_5 [2] : vector<4x8x8xf32> to vector<4x8xf32>
    %38 = vector.shape_cast %37 : vector<4x8xf32> to vector<4x8x1xf32>
    %39 = vector.broadcast %38 : vector<4x8x1xf32> to vector<4x8x8xf32>
    %40 = arith.subf %36, %39 : vector<4x8x8xf32>
    %41 = math.exp %40 : vector<4x8x8xf32>
    %cst_6 = arith.constant dense<0.000000e+00> : vector<4x8xf32>
    %42 = vector.multi_reduction <add>, %41, %cst_6 [2] : vector<4x8x8xf32> to vector<4x8xf32>
    %43 = vector.shape_cast %42 : vector<4x8xf32> to vector<4x8x1xf32>
    %44 = arith.truncf %41 : vector<4x8x8xf32> to vector<4x8x8xbf16>
    "tpu.trace_start"() <{level = 10 : i32, message = "htu,hud->htd"}> : () -> ()
    %cst_7 = arith.constant dense<0.000000e+00> : vector<4x8x8xf32>
    %45 = tpu.matmul %44, %35, %cst_7 {dimension_numbers = #tpu.dot_dimension_numbers<[2], [1], [1], [2], [0, 0, 0, 1, 1, 2], [0], [0]>} : vector<4x8x8xbf16>, vector<4x8x8xbf16>, vector<4x8x8xf32> -> vector<4x8x8xf32>
    "tpu.trace_stop"() : () -> ()
    %46 = tpu.reciprocal %43 {approx = true} : vector<4x8x1xf32> -> vector<4x8x1xf32>
    %47 = vector.broadcast %46 : vector<4x8x1xf32> to vector<4x8x8xf32>
    %48 = arith.mulf %45, %47 : vector<4x8x8xf32>
    %49 = arith.truncf %48 : vector<4x8x8xf32> to vector<4x8x8xbf16>
    %c0_8 = arith.constant 0 : index
    %c0_9 = arith.constant 0 : index
    %c0_10 = arith.constant 0 : index
    %50 = vector.load %arg3[%c0_8, %c0_9, %c0_10] : memref<4x8x32xbf16, #tpu.memory_space<vmem>>, vector<4x8x32xbf16>
    "tpu.trace_start"() <{level = 10 : i32, message = "htd,hde->hte"}> : () -> ()
    %cst_11 = arith.constant dense<0.000000e+00> : vector<4x8x32xf32>
    %51 = tpu.matmul %49, %50, %cst_11 {dimension_numbers = #tpu.dot_dimension_numbers<[2], [1], [1], [2], [0, 0, 0, 1, 1, 2], [0], [0]>} : vector<4x8x8xbf16>, vector<4x8x32xbf16>, vector<4x8x32xf32> -> vector<4x8x32xf32>
    "tpu.trace_stop"() : () -> ()
    %cst_12 = arith.constant dense<0.000000e+00> : vector<8x32xf32>
    %52 = vector.multi_reduction <add>, %51, %cst_12 [0] : vector<4x8x32xf32> to vector<8x32xf32>
    %c0_13 = arith.constant 0 : index
    %c0_14 = arith.constant 0 : index
    %53 = vector.load %arg4[%c0_13, %c0_14] : memref<1x32xf32, #tpu.memory_space<vmem>>, vector<1x32xf32>
    %54 = vector.broadcast %53 : vector<1x32xf32> to vector<8x32xf32>
    %55 = arith.addf %52, %54 : vector<8x32xf32>
    %56 = arith.addf %55, %1 : vector<8x32xf32>
    %cst_15 = arith.constant dense<0.000000e+00> : vector<8xf32>
    %57 = vector.multi_reduction <add>, %56, %cst_15 [1] : vector<8x32xf32> to vector<8xf32>
    %58 = vector.shape_cast %57 : vector<8xf32> to vector<8x1xf32>
    %cst_16 = arith.constant 3.200000e+01 : f32
    %59 = vector.broadcast %cst_16 : f32 to vector<8x1xf32>
    %60 = arith.divf %58, %59 : vector<8x1xf32>
    %61 = vector.broadcast %60 : vector<8x1xf32> to vector<8x32xf32>
    %62 = arith.subf %56, %61 : vector<8x32xf32>
    %63 = arith.mulf %62, %62 : vector<8x32xf32>
    %cst_17 = arith.constant dense<0.000000e+00> : vector<8xf32>
    %64 = vector.multi_reduction <add>, %63, %cst_17 [1] : vector<8x32xf32> to vector<8xf32>
    %65 = vector.shape_cast %64 : vector<8xf32> to vector<8x1xf32>
    %cst_18 = arith.constant 3.200000e+01 : f32
    %66 = vector.broadcast %cst_18 : f32 to vector<8x1xf32>
    %67 = arith.divf %65, %66 : vector<8x1xf32>
    %68 = vector.broadcast %60 : vector<8x1xf32> to vector<8x32xf32>
    %69 = arith.subf %56, %68 : vector<8x32xf32>
    %cst_19 = arith.constant 9.99999974E-6 : f32
    %70 = vector.broadcast %cst_19 : f32 to vector<8x1xf32>
    %71 = arith.addf %67, %70 : vector<8x1xf32>
    %72 = math.rsqrt %71 : vector<8x1xf32>
    %73 = vector.broadcast %72 : vector<8x1xf32> to vector<8x32xf32>
    %74 = arith.mulf %69, %73 : vector<8x32xf32>
    %c0_20 = arith.constant 0 : index
    %c0_21 = arith.constant 0 : index
    %75 = vector.load %arg5[%c0_20, %c0_21] : memref<1x32xf32, #tpu.memory_space<vmem>>, vector<1x32xf32>
    %76 = vector.broadcast %75 : vector<1x32xf32> to vector<8x32xf32>
    %77 = arith.mulf %74, %76 : vector<8x32xf32>
    %c0_22 = arith.constant 0 : index
    %c0_23 = arith.constant 0 : index
    %78 = vector.load %arg6[%c0_22, %c0_23] : memref<1x32xf32, #tpu.memory_space<vmem>>, vector<1x32xf32>
    %79 = vector.broadcast %78 : vector<1x32xf32> to vector<8x32xf32>
    %80 = arith.addf %77, %79 : vector<8x32xf32>
    %81 = arith.truncf %80 : vector<8x32xf32> to vector<8x32xbf16>
    %c0_24 = arith.constant 0 : index
    %c0_25 = arith.constant 0 : index
    %82 = vector.load %arg7[%c0_24, %c0_25] : memref<32x128xbf16, #tpu.memory_space<vmem>>, vector<32x128xbf16>
    %cst_26 = arith.constant dense<0.000000e+00> : vector<8x128xf32>
    %83 = tpu.matmul %81, %82, %cst_26 {dimension_numbers = #tpu.dot_dimension_numbers<[1], [0], [0], [1], [0, 0, 1, 1], [], []>} : vector<8x32xbf16>, vector<32x128xbf16>, vector<8x128xf32> -> vector<8x128xf32>
    %c0_27 = arith.constant 0 : index
    %c0_28 = arith.constant 0 : index
    %84 = vector.load %arg8[%c0_27, %c0_28] : memref<1x128xf32, #tpu.memory_space<vmem>>, vector<1x128xf32>
    %85 = vector.broadcast %84 : vector<1x128xf32> to vector<8x128xf32>
    %86 = arith.addf %83, %85 : vector<8x128xf32>
    %cst_29 = arith.constant 0.000000e+00 : f32
    %87 = vector.broadcast %cst_29 : f32 to vector<8x128xf32>
    %88 = arith.maximumf %86, %87 : vector<8x128xf32>
    %89 = arith.truncf %88 : vector<8x128xf32> to vector<8x128xbf16>
    %c0_30 = arith.constant 0 : index
    %c0_31 = arith.constant 0 : index
    %90 = vector.load %arg9[%c0_30, %c0_31] : memref<128x32xbf16, #tpu.memory_space<vmem>>, vector<128x32xbf16>
    %cst_32 = arith.constant dense<0.000000e+00> : vector<8x32xf32>
    %91 = tpu.matmul %89, %90, %cst_32 {dimension_numbers = #tpu.dot_dimension_numbers<[1], [0], [0], [1], [0, 0, 1, 1], [], []>} : vector<8x128xbf16>, vector<128x32xbf16>, vector<8x32xf32> -> vector<8x32xf32>
    %c0_33 = arith.constant 0 : index
    %c0_34 = arith.constant 0 : index
    %92 = vector.load %arg10[%c0_33, %c0_34] : memref<1x32xf32, #tpu.memory_space<vmem>>, vector<1x32xf32>
    %93 = vector.broadcast %92 : vector<1x32xf32> to vector<8x32xf32>
    %94 = arith.addf %91, %93 : vector<8x32xf32>
    %95 = arith.addf %94, %80 : vector<8x32xf32>
    %cst_35 = arith.constant dense<0.000000e+00> : vector<8xf32>
    %96 = vector.multi_reduction <add>, %95, %cst_35 [1] : vector<8x32xf32> to vector<8xf32>
    %97 = vector.shape_cast %96 : vector<8xf32> to vector<8x1xf32>
    %cst_36 = arith.constant 3.200000e+01 : f32
    %98 = vector.broadcast %cst_36 : f32 to vector<8x1xf32>
    %99 = arith.divf %97, %98 : vector<8x1xf32>
    %100 = vector.broadcast %99 : vector<8x1xf32> to vector<8x32xf32>
    %101 = arith.subf %95, %100 : vector<8x32xf32>
    %102 = arith.mulf %101, %101 : vector<8x32xf32>
    %cst_37 = arith.constant dense<0.000000e+00> : vector<8xf32>
    %103 = vector.multi_reduction <add>, %102, %cst_37 [1] : vector<8x32xf32> to vector<8xf32>
    %104 = vector.shape_cast %103 : vector<8xf32> to vector<8x1xf32>
    %cst_38 = arith.constant 3.200000e+01 : f32
    %105 = vector.broadcast %cst_38 : f32 to vector<8x1xf32>
    %106 = arith.divf %104, %105 : vector<8x1xf32>
    %107 = vector.broadcast %99 : vector<8x1xf32> to vector<8x32xf32>
    %108 = arith.subf %95, %107 : vector<8x32xf32>
    %cst_39 = arith.constant 9.99999974E-6 : f32
    %109 = vector.broadcast %cst_39 : f32 to vector<8x1xf32>
    %110 = arith.addf %106, %109 : vector<8x1xf32>
    %111 = math.rsqrt %110 : vector<8x1xf32>
    %112 = vector.broadcast %111 : vector<8x1xf32> to vector<8x32xf32>
    %113 = arith.mulf %108, %112 : vector<8x32xf32>
    %c0_40 = arith.constant 0 : index
    %c0_41 = arith.constant 0 : index
    %114 = vector.load %arg11[%c0_40, %c0_41] : memref<1x32xf32, #tpu.memory_space<vmem>>, vector<1x32xf32>
    %115 = vector.broadcast %114 : vector<1x32xf32> to vector<8x32xf32>
    %116 = arith.mulf %113, %115 : vector<8x32xf32>
    %c0_42 = arith.constant 0 : index
    %c0_43 = arith.constant 0 : index
    %117 = vector.load %arg12[%c0_42, %c0_43] : memref<1x32xf32, #tpu.memory_space<vmem>>, vector<1x32xf32>
    %118 = vector.broadcast %117 : vector<1x32xf32> to vector<8x32xf32>
    %119 = arith.addf %116, %118 : vector<8x32xf32>
    %c0_44 = arith.constant 0 : index
    %c0_45 = arith.constant 0 : index
    %c0_46 = arith.constant 0 : index
    %120 = vector.load %arg13[%c0_44, %c0_45, %c0_46] : memref<1x8x32xf32, #tpu.memory_space<vmem>>, vector<1x8x32xf32>
    %121 = vector.shape_cast %120 : vector<1x8x32xf32> to vector<8x32xf32>
    %122 = vector.shape_cast %119 : vector<8x32xf32> to vector<1x8x32xf32>
    tpu.vector_store %arg13[%c0_44, %c0_45, %c0_46], %122 {strides = array<i32>} : memref<1x8x32xf32, #tpu.memory_space<vmem>>, vector<1x8x32xf32>,
    return
  }
  func.func @transform_0(%arg0: i32) -> (i32, i32, i32) {
    %c0_i32 = arith.constant 0 : i32
    %c0_i32_0 = arith.constant 0 : i32
    %c0_i32_1 = arith.constant 0 : i32
    return %arg0, %c0_i32, %c0_i32_0 : i32, i32, i32
  }
  func.func @transform_1(%arg0: i32) -> (i32, i32) {
    %c0_i32 = arith.constant 0 : i32
    %c0_i32_0 = arith.constant 0 : i32
    %c0_i32_1 = arith.constant 0 : i32
    return %c0_i32, %c0_i32_0 : i32, i32
  }
  func.func @transform_2(%arg0: i32) -> (i32, i32, i32) {
    %c0_i32 = arith.constant 0 : i32
    %c0_i32_0 = arith.constant 0 : i32
    %c0_i32_1 = arith.constant 0 : i32
    %c0_i32_2 = arith.constant 0 : i32
    return %c0_i32, %c0_i32_0, %c0_i32_1 : i32, i32, i32
  }
  func.func @transform_3(%arg0: i32) -> (i32, i32) {
    %c0_i32 = arith.constant 0 : i32
    %c0_i32_0 = arith.constant 0 : i32
    %c0_i32_1 = arith.constant 0 : i32
    return %c0_i32, %c0_i32_0 : i32, i32
  }
  func.func @transform_4(%arg0: i32) -> (i32, i32) {
    %c0_i32 = arith.constant 0 : i32
    %c0_i32_0 = arith.constant 0 : i32
    %c0_i32_1 = arith.constant 0 : i32
    return %c0_i32, %c0_i32_0 : i32, i32
  }
  func.func @transform_5(%arg0: i32) -> (i32, i32) {
    %c0_i32 = arith.constant 0 : i32
    %c0_i32_0 = arith.constant 0 : i32
    %c0_i32_1 = arith.constant 0 : i32
    return %c0_i32, %c0_i32_0 : i32, i32
  }
  func.func @transform_6(%arg0: i32) -> (i32, i32) {
    %c0_i32 = arith.constant 0 : i32
    %c0_i32_0 = arith.constant 0 : i32
    %c0_i32_1 = arith.constant 0 : i32
    return %c0_i32, %c0_i32_0 : i32, i32
  }
  func.func @transform_7(%arg0: i32) -> (i32, i32) {
    %c0_i32 = arith.constant 0 : i32
    %c0_i32_0 = arith.constant 0 : i32
    %c0_i32_1 = arith.constant 0 : i32
    return %c0_i32, %c0_i32_0 : i32, i32
  }
  func.func @transform_8(%arg0: i32) -> (i32, i32) {
    %c0_i32 = arith.constant 0 : i32
    %c0_i32_0 = arith.constant 0 : i32
    %c0_i32_1 = arith.constant 0 : i32
    return %c0_i32, %c0_i32_0 : i32, i32
  }
  func.func @transform_9(%arg0: i32) -> (i32, i32) {
    %c0_i32 = arith.constant 0 : i32
    %c0_i32_0 = arith.constant 0 : i32
    %c0_i32_1 = arith.constant 0 : i32
    return %c0_i32, %c0_i32_0 : i32, i32
  }
  func.func @transform_10(%arg0: i32) -> (i32, i32) {
    %c0_i32 = arith.constant 0 : i32
    %c0_i32_0 = arith.constant 0 : i32
    %c0_i32_1 = arith.constant 0 : i32
    return %c0_i32, %c0_i32_0 : i32, i32
  }
  func.func @transform_11(%arg0: i32) -> (i32, i32) {
    %c0_i32 = arith.constant 0 : i32
    %c0_i32_0 = arith.constant 0 : i32
    %c0_i32_1 = arith.constant 0 : i32
    return %c0_i32, %c0_i32_0 : i32, i32
  }
  func.func @transform_12(%arg0: i32) -> (i32, i32, i32) {
    %c0_i32 = arith.constant 0 : i32
    %c0_i32_0 = arith.constant 0 : i32
    %c0_i32_1 = arith.constant 0 : i32
    return %arg0, %c0_i32, %c0_i32_0 : i32, i32, i32
  }
}

</mosaic_0001>

<llo_original>
// kernel: tpu_custom_call.1
$region0: #{tpu_custom_call.1}
  #allocation0 [shape = 'u32[]', space=smem, size = 0x4, offset = 0x4, fixed_abs, tag = 'smem constant byte address 0x4 - core index']
  #allocation1 [shape = 'u32[144,128]{1,0:T(1,128)}', space=vmem, size = 0x12000, scoped, tag = 'internal scratch']
  %s0 = inlined_call_operand.vmem [shape: f32[2,8,32], index: 0, kind: input, shape index: {}]
  %s1 = inlined_call_operand.vmem [shape: bf16[32,96], index: 1, kind: input, shape index: {}]
  %s2 = inlined_call_operand.vmem [shape: bf16[4,8,32], index: 2, kind: input, shape index: {}]
  %s3 = inlined_call_operand.vmem [shape: f32[1,32], index: 3, kind: input, shape index: {}]
  %s4 = inlined_call_operand.vmem [shape: f32[1,32], index: 4, kind: input, shape index: {}]
  %s5 = inlined_call_operand.vmem [shape: f32[1,32], index: 5, kind: input, shape index: {}]
  %s6 = inlined_call_operand.vmem [shape: bf16[32,128], index: 6, kind: input, shape index: {}]
  %s7 = inlined_call_operand.vmem [shape: f32[1,128], index: 7, kind: input, shape index: {}]
  %s8 = inlined_call_operand.vmem [shape: bf16[128,32], index: 8, kind: input, shape index: {}]
  %s9 = inlined_call_operand.vmem [shape: f32[1,32], index: 9, kind: input, shape index: {}]
  %s10 = inlined_call_operand.vmem [shape: f32[1,32], index: 10, kind: input, shape index: {}]
  %s11 = inlined_call_operand.vmem [shape: f32[1,32], index: 11, kind: input, shape index: {}]
  %s12 = inlined_call_operand.hbm [shape: f32[2,8,32], index: 12, kind: output, shape index: {}]
  %s13 = sld [smem:[#allocation0]]
  $region81: #{tpu_custom_call.1} parent=0
    _
  %s15 = ssub.s32 1, %s13
  %s16 = scalar_select 0, %s15, %s13
  $region1: #{tpu_custom_call.1} parent=0
    #allocation2 [shape = 'u8[8192]{0}', space=vmem, size = 0x2000, scoped, tag = 'output window, operand 0']
    #allocation3 [shape = 's32[2]{0}', space=sflag, size = 0x8, scoped, tag = 'scoped memory for tpu_custom_call.1']
    %17 = vsyncpa [#allocation3], 0
    %s18 = scalar_lea.sflag [#allocation3], 1
    %19 = vsyncpa %s18, 0
    loop: start=0, step=1, limit=4
    $region2: #{tpu_custom_call.1} parent=1 // loop_pre_header
      _
    $region3: #{tpu_custom_call.1} parent=1 // loop_header
      %s21 = sphi 0, %s25
      %p22 = scmp.ge.s32.totalorder %s21, 4
      %s31 = sphi 0, %s33
      %s34 = sphi 0, %s31
      %s35 = sphi 0, %s34
      %s51 = sphi 0, %s35
      %s55 = sphi 0, %s55
      %s57 = sphi 0, %s55
      %s58 = sphi 0, %s57
      %s72 = sphi 0, %s58
      %s76 = sphi 0, %s76
      %s78 = sphi 0, %s76
      %s79 = sphi 0, %s78
      %s93 = sphi 0, %s79
      %s97 = sphi 0, %s97
      %s99 = sphi 0, %s97
      %s100 = sphi 0, %s99
      %s114 = sphi 0, %s100
      %s118 = sphi 0, %s118
      %s120 = sphi 0, %s118
      %s121 = sphi 0, %s120
      %s135 = sphi 0, %s121
      %s139 = sphi 0, %s139
      %s141 = sphi 0, %s139
      %s142 = sphi 0, %s141
      %s156 = sphi 0, %s142
      %s160 = sphi 0, %s160
      %s162 = sphi 0, %s160
      %s163 = sphi 0, %s162
      %s177 = sphi 0, %s163
      %s181 = sphi 0, %s181
      %s183 = sphi 0, %s181
      %s184 = sphi 0, %s183
      %s198 = sphi 0, %s184
      %s202 = sphi 0, %s202
      %s204 = sphi 0, %s202
      %s205 = sphi 0, %s204
      %s219 = sphi 0, %s205
      %s223 = sphi 0, %s223
      %s225 = sphi 0, %s223
      %s226 = sphi 0, %s225
      %s240 = sphi 0, %s226
      %s244 = sphi 0, %s244
      %s246 = sphi 0, %s244
      %s247 = sphi 0, %s246
      %s261 = sphi 0, %s247
      %s265 = sphi 0, %s265
      %s267 = sphi 0, %s265
      %s268 = sphi 0, %s267
      %s282 = sphi 0, %s268
      %s288 = sphi 0, %s290
      %s291 = sphi 0, %s288
      %s292 = sphi 0, %s291
      %s308 = sphi 0, %s292
    $region4: #{tpu_custom_call.1} parent=1 // loop_header_branch
      %24 = sbr.rel (%p22) target = $region8
    $region5: #{tpu_custom_call.1} parent=1 // loop_body
      %s26 = ssub.s32 %s21, 1
      %s27 = ssub.s32 %s21, 2
      %s28 = sadd.s32 %s21, 1
      %s29 = ssub.s32 %s21, %s28
      %p30 = scmp.eq.s32.totalorder %s29, 0
      %s32 = sadd.s32 %s31, 1
      %s33 = scalar_select %p30, %s31, %s32
      %p36 = pneg %p30
      %p37 = scmp.eq.s32.totalorder %s21, 1
      %p38 = por %p36, %p37
      %p39 = scmp.ne.s32.totalorder %s31, %s34
      %p40 = scmp.eq.s32.totalorder %s21, 0
      %p41 = por %p39, %p40
      %p42 = scmp.ne.s32.totalorder %s31, %s34
      %p43 = scmp.eq.s32.totalorder %s26, 1
      %p44 = por %p42, %p43
      %p45 = scmp.ne.s32.totalorder %s34, %s35
      %p46 = scmp.eq.s32.totalorder %s26, 0
      %p47 = por %p45, %p46
      %p48 = scmp.ne.s32.totalorder %s34, %s35
      %p49 = scmp.eq.s32.totalorder %s27, 1
      %p50 = por %p48, %p49
      %p52 = scmp.ne.s32.totalorder %s35, %s51
      %p53 = scmp.eq.s32.totalorder %s27, 0
      %p54 = por %p52, %p53
      %s56 = sadd.s32 %s55, 1
      %p59 = scmp.eq.s32.totalorder %s21, 1
      %p60 = scmp.ne.s32.totalorder %s55, %s57
      %p61 = scmp.eq.s32.totalorder %s21, 0
      %p62 = por %p60, %p61
      %p63 = scmp.ne.s32.totalorder %s55, %s57
      %p64 = scmp.eq.s32.totalorder %s26, 1
      %p65 = por %p63, %p64
      %p66 = scmp.ne.s32.totalorder %s57, %s58
      %p67 = scmp.eq.s32.totalorder %s26, 0
      %p68 = por %p66, %p67
      %p69 = scmp.ne.s32.totalorder %s57, %s58
      %p70 = scmp.eq.s32.totalorder %s27, 1
      %p71 = por %p69, %p70
      %p73 = scmp.ne.s32.totalorder %s58, %s72
      %p74 = scmp.eq.s32.totalorder %s27, 0
      %p75 = por %p73, %p74
      %s77 = sadd.s32 %s76, 1
      %p80 = scmp.eq.s32.totalorder %s21, 1
      %p81 = scmp.ne.s32.totalorder %s76, %s78
      %p82 = scmp.eq.s32.totalorder %s21, 0
      %p83 = por %p81, %p82
      %p84 = scmp.ne.s32.totalorder %s76, %s78
      %p85 = scmp.eq.s32.totalorder %s26, 1
      %p86 = por %p84, %p85
      %p87 = scmp.ne.s32.totalorder %s78, %s79
      %p88 = scmp.eq.s32.totalorder %s26, 0
      %p89 = por %p87, %p88
      %p90 = scmp.ne.s32.totalorder %s78, %s79
      %p91 = scmp.eq.s32.totalorder %s27, 1
      %p92 = por %p90, %p91
      %p94 = scmp.ne.s32.totalorder %s79, %s93
      %p95 = scmp.eq.s32.totalorder %s27, 0
      %p96 = por %p94, %p95
      %s98 = sadd.s32 %s97, 1
      %p101 = scmp.eq.s32.totalorder %s21, 1
      %p102 = scmp.ne.s32.totalorder %s97, %s99
      %p103 = scmp.eq.s32.totalorder %s21, 0
      %p104 = por %p102, %p103
      %p105 = scmp.ne.s32.totalorder %s97, %s99
      %p106 = scmp.eq.s32.totalorder %s26, 1
      %p107 = por %p105, %p106
      %p108 = scmp.ne.s32.totalorder %s99, %s100
      %p109 = scmp.eq.s32.totalorder %s26, 0
      %p110 = por %p108, %p109
      %p111 = scmp.ne.s32.totalorder %s99, %s100
      %p112 = scmp.eq.s32.totalorder %s27, 1
      %p113 = por %p111, %p112
      %p115 = scmp.ne.s32.totalorder %s100, %s114
      %p116 = scmp.eq.s32.totalorder %s27, 0
      %p117 = por %p115, %p116
      %s119 = sadd.s32 %s118, 1
      %p122 = scmp.eq.s32.totalorder %s21, 1
      %p123 = scmp.ne.s32.totalorder %s118, %s120
      %p124 = scmp.eq.s32.totalorder %s21, 0
      %p125 = por %p123, %p124
      %p126 = scmp.ne.s32.totalorder %s118, %s120
      %p127 = scmp.eq.s32.totalorder %s26, 1
      %p128 = por %p126, %p127
      %p129 = scmp.ne.s32.totalorder %s120, %s121
      %p130 = scmp.eq.s32.totalorder %s26, 0
      %p131 = por %p129, %p130
      %p132 = scmp.ne.s32.totalorder %s120, %s121
      %p133 = scmp.eq.s32.totalorder %s27, 1
      %p134 = por %p132, %p133
      %p136 = scmp.ne.s32.totalorder %s121, %s135
      %p137 = scmp.eq.s32.totalorder %s27, 0
      %p138 = por %p136, %p137
      %s140 = sadd.s32 %s139, 1
      %p143 = scmp.eq.s32.totalorder %s21, 1
      %p144 = scmp.ne.s32.totalorder %s139, %s141
      %p145 = scmp.eq.s32.totalorder %s21, 0
      %p146 = por %p144, %p145
      %p147 = scmp.ne.s32.totalorder %s139, %s141
      %p148 = scmp.eq.s32.totalorder %s26, 1
      %p149 = por %p147, %p148
      %p150 = scmp.ne.s32.totalorder %s141, %s142
      %p151 = scmp.eq.s32.totalorder %s26, 0
      %p152 = por %p150, %p151
      %p153 = scmp.ne.s32.totalorder %s141, %s142
      %p154 = scmp.eq.s32.totalorder %s27, 1
      %p155 = por %p153, %p154
      %p157 = scmp.ne.s32.totalorder %s142, %s156
      %p158 = scmp.eq.s32.totalorder %s27, 0
      %p159 = por %p157, %p158
      %s161 = sadd.s32 %s160, 1
      %p164 = scmp.eq.s32.totalorder %s21, 1
      %p165 = scmp.ne.s32.totalorder %s160, %s162
      %p166 = scmp.eq.s32.totalorder %s21, 0
      %p167 = por %p165, %p166
      %p168 = scmp.ne.s32.totalorder %s160, %s162
      %p169 = scmp.eq.s32.totalorder %s26, 1
      %p170 = por %p168, %p169
      %p171 = scmp.ne.s32.totalorder %s162, %s163
      %p172 = scmp.eq.s32.totalorder %s26, 0
      %p173 = por %p171, %p172
      %p174 = scmp.ne.s32.totalorder %s162, %s163
      %p175 = scmp.eq.s32.totalorder %s27, 1
      %p176 = por %p174, %p175
      %p178 = scmp.ne.s32.totalorder %s163, %s177
      %p179 = scmp.eq.s32.totalorder %s27, 0
      %p180 = por %p178, %p179
      %s182 = sadd.s32 %s181, 1
      %p185 = scmp.eq.s32.totalorder %s21, 1
      %p186 = scmp.ne.s32.totalorder %s181, %s183
      %p187 = scmp.eq.s32.totalorder %s21, 0
      %p188 = por %p186, %p187
      %p189 = scmp.ne.s32.totalorder %s181, %s183
      %p190 = scmp.eq.s32.totalorder %s26, 1
      %p191 = por %p189, %p190
      %p192 = scmp.ne.s32.totalorder %s183, %s184
      %p193 = scmp.eq.s32.totalorder %s26, 0
      %p194 = por %p192, %p193
      %p195 = scmp.ne.s32.totalorder %s183, %s184
      %p196 = scmp.eq.s32.totalorder %s27, 1
      %p197 = por %p195, %p196
      %p199 = scmp.ne.s32.totalorder %s184, %s198
      %p200 = scmp.eq.s32.totalorder %s27, 0
      %p201 = por %p199, %p200
      %s203 = sadd.s32 %s202, 1
      %p206 = scmp.eq.s32.totalorder %s21, 1
      %p207 = scmp.ne.s32.totalorder %s202, %s204
      %p208 = scmp.eq.s32.totalorder %s21, 0
      %p209 = por %p207, %p208
      %p210 = scmp.ne.s32.totalorder %s202, %s204
      %p211 = scmp.eq.s32.totalorder %s26, 1
      %p212 = por %p210, %p211
      %p213 = scmp.ne.s32.totalorder %s204, %s205
      %p214 = scmp.eq.s32.totalorder %s26, 0
      %p215 = por %p213, %p214
      %p216 = scmp.ne.s32.totalorder %s204, %s205
      %p217 = scmp.eq.s32.totalorder %s27, 1
      %p218 = por %p216, %p217
      %p220 = scmp.ne.s32.totalorder %s205, %s219
      %p221 = scmp.eq.s32.totalorder %s27, 0
      %p222 = por %p220, %p221
      %s224 = sadd.s32 %s223, 1
      %p227 = scmp.eq.s32.totalorder %s21, 1
      %p228 = scmp.ne.s32.totalorder %s223, %s225
      %p229 = scmp.eq.s32.totalorder %s21, 0
      %p230 = por %p228, %p229
      %p231 = scmp.ne.s32.totalorder %s223, %s225
      %p232 = scmp.eq.s32.totalorder %s26, 1
      %p233 = por %p231, %p232
      %p234 = scmp.ne.s32.totalorder %s225, %s226
      %p235 = scmp.eq.s32.totalorder %s26, 0
      %p236 = por %p234, %p235
      %p237 = scmp.ne.s32.totalorder %s225, %s226
      %p238 = scmp.eq.s32.totalorder %s27, 1
      %p239 = por %p237, %p238
      %p241 = scmp.ne.s32.totalorder %s226, %s240
      %p242 = scmp.eq.s32.totalorder %s27, 0
      %p243 = por %p241, %p242
      %s245 = sadd.s32 %s244, 1
      %p248 = scmp.eq.s32.totalorder %s21, 1
      %p249 = scmp.ne.s32.totalorder %s244, %s246
      %p250 = scmp.eq.s32.totalorder %s21, 0
      %p251 = por %p249, %p250
      %p252 = scmp.ne.s32.totalorder %s244, %s246
      %p253 = scmp.eq.s32.totalorder %s26, 1
      %p254 = por %p252, %p253
      %p255 = scmp.ne.s32.totalorder %s246, %s247
      %p256 = scmp.eq.s32.totalorder %s26, 0
      %p257 = por %p255, %p256
      %p258 = scmp.ne.s32.totalorder %s246, %s247
      %p259 = scmp.eq.s32.totalorder %s27, 1
      %p260 = por %p258, %p259
      %p262 = scmp.ne.s32.totalorder %s247, %s261
      %p263 = scmp.eq.s32.totalorder %s27, 0
      %p264 = por %p262, %p263
      %s266 = sadd.s32 %s265, 1
      %p269 = scmp.eq.s32.totalorder %s21, 1
      %p270 = scmp.ne.s32.totalorder %s265, %s267
      %p271 = scmp.eq.s32.totalorder %s21, 0
      %p272 = por %p270, %p271
      %p273 = scmp.ne.s32.totalorder %s265, %s267
      %p274 = scmp.eq.s32.totalorder %s26, 1
      %p275 = por %p273, %p274
      %p276 = scmp.ne.s32.totalorder %s267, %s268
      %p277 = scmp.eq.s32.totalorder %s26, 0
      %p278 = por %p276, %p277
      %p279 = scmp.ne.s32.totalorder %s267, %s268
      %p280 = scmp.eq.s32.totalorder %s27, 1
      %p281 = por %p279, %p280
      %p283 = scmp.ne.s32.totalorder %s268, %s282
      %p284 = scmp.eq.s32.totalorder %s27, 0
      %p285 = por %p283, %p284
      %s286 = ssub.s32 %s21, %s28
      %p287 = scmp.eq.s32.totalorder %s286, 0
      %s289 = sadd.s32 %s288, 1
      %s290 = scalar_select %p287, %s288, %s289
      %p293 = pneg %p287
      %p294 = scmp.eq.s32.totalorder %s21, 1
      %p295 = por %p293, %p294
      %p296 = scmp.ne.s32.totalorder %s288, %s291
      %p297 = scmp.eq.s32.totalorder %s21, 0
      %p298 = por %p296, %p297
      %p299 = scmp.ne.s32.totalorder %s288, %s291
      %p300 = scmp.eq.s32.totalorder %s26, 1
      %p301 = por %p299, %p300
      %p302 = scmp.ne.s32.totalorder %s291, %s292
      %p303 = scmp.eq.s32.totalorder %s26, 0
      %p304 = por %p302, %p303
      %p305 = scmp.ne.s32.totalorder %s291, %s292
      %p306 = scmp.eq.s32.totalorder %s27, 1
      %p307 = por %p305, %p306
      %p309 = scmp.ne.s32.totalorder %s292, %s308
      %p310 = scmp.eq.s32.totalorder %s27, 0
      %p311 = por %p309, %p310
      %p312 = scmp.le.s32.totalorder 1, %s21
      %p313 = scmp.lt.s32.totalorder %s21, 3
      %p314 = pnand %p312, %p313
      %p315 = pneg %p314
      // Predicated region
      $region9: #{tpu_custom_call.1} parent=5 // pred_check
        _
      $region10: #{tpu_custom_call.1} parent=5 // pred_check_branch
        %317 = sbr.rel (%p314) target = $region12
      $region11: #{tpu_custom_call.1} parent=5 // pred_region
        %s318 = ssub.s32 %s21, 1
        // Predicated region
        $region13: #{tpu_custom_call.1} parent=11 // pred_check
          %p319 = pneg %p68
        $region14: #{tpu_custom_call.1} parent=11 // pred_check_branch
          %321 = sbr.rel (%p319) target = $region16
        $region15: #{tpu_custom_call.1} parent=11 // pred_region
          _
        $region16: #{tpu_custom_call.1} parent=11 // pred_fallthru
          _
        // Predicated region
        $region17: #{tpu_custom_call.1} parent=11 // pred_check
          %p322 = pneg %p89
        $region18: #{tpu_custom_call.1} parent=11 // pred_check_branch
          %324 = sbr.rel (%p322) target = $region20
        $region19: #{tpu_custom_call.1} parent=11 // pred_region
          _
        $region20: #{tpu_custom_call.1} parent=11 // pred_fallthru
          _
        // Predicated region
        $region21: #{tpu_custom_call.1} parent=11 // pred_check
          %p325 = pneg %p110
        $region22: #{tpu_custom_call.1} parent=11 // pred_check_branch
          %327 = sbr.rel (%p325) target = $region24
        $region23: #{tpu_custom_call.1} parent=11 // pred_region
          _
        $region24: #{tpu_custom_call.1} parent=11 // pred_fallthru
          _
        // Predicated region
        $region25: #{tpu_custom_call.1} parent=11 // pred_check
          %p328 = pneg %p131
        $region26: #{tpu_custom_call.1} parent=11 // pred_check_branch
          %330 = sbr.rel (%p328) target = $region28
        $region27: #{tpu_custom_call.1} parent=11 // pred_region
          _
        $region28: #{tpu_custom_call.1} parent=11 // pred_fallthru
          _
        // Predicated region
        $region29: #{tpu_custom_call.1} parent=11 // pred_check
          %p331 = pneg %p152
        $region30: #{tpu_custom_call.1} parent=11 // pred_check_branch
          %333 = sbr.rel (%p331) target = $region32
        $region31: #{tpu_custom_call.1} parent=11 // pred_region
          _
        $region32: #{tpu_custom_call.1} parent=11 // pred_fallthru
          _
        // Predicated region
        $region33: #{tpu_custom_call.1} parent=11 // pred_check
          %p334 = pneg %p173
        $region34: #{tpu_custom_call.1} parent=11 // pred_check_branch
          %336 = sbr.rel (%p334) target = $region36
        $region35: #{tpu_custom_call.1} parent=11 // pred_region
          _
        $region36: #{tpu_custom_call.1} parent=11 // pred_fallthru
          _
        // Predicated region
        $region37: #{tpu_custom_call.1} parent=11 // pred_check
          %p337 = pneg %p194
        $region38: #{tpu_custom_call.1} parent=11 // pred_check_branch
          %339 = sbr.rel (%p337) target = $region40
        $region39: #{tpu_custom_call.1} parent=11 // pred_region
          _
        $region40: #{tpu_custom_call.1} parent=11 // pred_fallthru
          _
        // Predicated region
        $region41: #{tpu_custom_call.1} parent=11 // pred_check
          %p340 = pneg %p215
        $region42: #{tpu_custom_call.1} parent=11 // pred_check_branch
          %342 = sbr.rel (%p340) target = $region44
        $region43: #{tpu_custom_call.1} parent=11 // pred_region
          _
        $region44: #{tpu_custom_call.1} parent=11 // pred_fallthru
          _
        // Predicated region
        $region45: #{tpu_custom_call.1} parent=11 // pred_check
          %p343 = pneg %p236
        $region46: #{tpu_custom_call.1} parent=11 // pred_check_branch
          %345 = sbr.rel (%p343) target = $region48
        $region47: #{tpu_custom_call.1} parent=11 // pred_region
          _
        $region48: #{tpu_custom_call.1} parent=11 // pred_fallthru
          _
        // Predicated region
        $region49: #{tpu_custom_call.1} parent=11 // pred_check
          %p346 = pneg %p257
        $region50: #{tpu_custom_call.1} parent=11 // pred_check_branch
          %348 = sbr.rel (%p346) target = $region52
        $region51: #{tpu_custom_call.1} parent=11 // pred_region
          _
        $region52: #{tpu_custom_call.1} parent=11 // pred_fallthru
          _
        // Predicated region
        $region53: #{tpu_custom_call.1} parent=11 // pred_check
          %p349 = pneg %p278
        $region54: #{tpu_custom_call.1} parent=11 // pred_check_branch
          %351 = sbr.rel (%p349) target = $region56
        $region55: #{tpu_custom_call.1} parent=11 // pred_region
          _
        $region56: #{tpu_custom_call.1} parent=11 // pred_fallthru
          _
      $region12: #{tpu_custom_call.1} parent=5 // pred_fallthru
        _
      %p352 = scmp.lt.s32.totalorder %s21, 2
      // Predicated region
      $region57: #{tpu_custom_call.1} parent=5 // pred_check
        %p353 = pneg %p352
      $region58: #{tpu_custom_call.1} parent=5 // pred_check_branch
        %355 = sbr.rel (%p353) target = $region60
      $region59: #{tpu_custom_call.1} parent=5 // pred_region
        // Predicated region
        $region61: #{tpu_custom_call.1} parent=59 // pred_check
          %p356 = pneg %p41
        $region62: #{tpu_custom_call.1} parent=59 // pred_check_branch
          %358 = sbr.rel (%p356) target = $region64
        $region63: #{tpu_custom_call.1} parent=59 // pred_region
          %p359 = scmp.lt.s32.totalorder %s21, 1
          %s360 = scalar_select %p359, %s21, 1
          %s361 = smul.addr %s360, 8
          %s362 = scalar_lea.vmem %s0, %s361
        $region64: #{tpu_custom_call.1} parent=59 // pred_fallthru
          _
      $region60: #{tpu_custom_call.1} parent=5 // pred_fallthru
        _
      %p363 = scmp.le.s32.totalorder 1, %s21
      %p364 = scmp.lt.s32.totalorder %s21, 3
      %p365 = pnand %p363, %p364
      %p366 = pneg %p365
      // Predicated region
      $region65: #{tpu_custom_call.1} parent=5 // pred_check
        _
      $region66: #{tpu_custom_call.1} parent=5 // pred_check_branch
        %368 = sbr.rel (%p365) target = $region68
      $region67: #{tpu_custom_call.1} parent=5 // pred_region
        %s369 = ssub.s32 %s21, 1
        %p370 = scmp.lt.s32.totalorder %s26, 1
        %s371 = scalar_select %p370, %s26, 1
        %s372 = smul.addr %s371, 8
        %s373 = scalar_lea.vmem %s0, %s372
        %p374 = pneg %p47
        %p375 = pneg %p44
        %p376 = pneg %p68
        %p377 = pneg %p65
        %p378 = pneg %p89
        %p379 = pneg %p86
        %p380 = pneg %p110
        %p381 = pneg %p107
        %p382 = pneg %p131
        %p383 = pneg %p128
        %p384 = pneg %p152
        %p385 = pneg %p149
        %p386 = pneg %p173
        %p387 = pneg %p170
        %p388 = pneg %p194
        %p389 = pneg %p191
        %p390 = pneg %p215
        %p391 = pneg %p212
        %p392 = pneg %p236
        %p393 = pneg %p233
        %p394 = pneg %p257
        %p395 = pneg %p254
        %p396 = pneg %p278
        %p397 = pneg %p275
        %p398 = pneg %p304
        %p399 = pneg %p301
        %s400 = sand.u32 %s291, 1
        %s401 = scalar_lea.sflag [#allocation3], %s400
        %s402 = sand.u32 %s291, 1
        %s403 = smul.addr %s402, 8
        %s404 = scalar_lea.vmem [#allocation2], %s403
        %p405 = scmp.lt.s32.totalorder %s26, 1
        %s406 = scalar_select %p405, %s26, 1
        %s407 = smul.addr %s406, 8
        %s408 = scalar_lea.vmem %s0, %s407
        %v410 = vld [vmem:[%s408] sm:$0xff]
        %v411 = vpack.c.bf16 %v410, %v410
        %v412 = vld [vmem:[%s1] sm:$0xf]
        %v413 = vld [vmem:[%s1 + $0x4] sm:$0xf]
        %v414 = vld [vmem:[%s1 + $0x8] sm:$0xf]
        %v415 = vld [vmem:[%s1 + $0xc] sm:$0xf]
        %v420 = vunpack.c.l.b16 %v412
        %v421 = vunpack.c.l.b16 %v413
        %v422 = vunpack.c.l.b16 %v414
        %v423 = vunpack.c.l.b16 %v415
        %v424 = vpack.c.b16 %v421, %v420
        %v425 = vpack.c.b16 %v423, %v422
        %vm428 = vcmask 261120
        %v430 = vsel %vm428, %v411, 0
        %432 = vmatprep.subr.bf16.mxu0 0
        %433 = vmatpush1.bf16.msra.mxu0 %v424
        %434 = vmatprep.subr.bf16.mxu0 0
        %435 = vmatpush1.bf16.msra.mxu0 %v425
        %436 = vmatprep.subr.bf16.mxu0 0
        %437 = vmatpush1.bf16.msra.mxu0 0
        %438 = vmatprep.subr.bf16.mxu0 0
        %439 = vmatpush1.bf16.msra.mxu0 0
        %440 = vmatprep.subr.bf16.mxu0 0
        %441 = vmatpush1.bf16.msra.mxu0 0
        %442 = vmatprep.subr.bf16.mxu0 0
        %443 = vmatpush1.bf16.msra.mxu0 0
        %444 = vmatprep.subr.bf16.mxu0 0
        %445 = vmatpush1.bf16.msra.mxu0 0
        %446 = vmatprep.subr.bf16.mxu0 0
        %447 = vmatpush1.bf16.msra.mxu0 0
        %448 = vmatprep.subr.bf16.mxu0 0
        %449 = vmatpush1.bf16.msra.mxu0 0
        %450 = vmatprep.subr.bf16.mxu0 0
        %451 = vmatpush1.bf16.msra.mxu0 0
        %452 = vmatprep.subr.bf16.mxu0 0
        %453 = vmatpush1.bf16.msra.mxu0 0
        %454 = vmatprep.subr.bf16.mxu0 0
        %455 = vmatpush1.bf16.msra.mxu0 0
        %456 = vmatprep.subr.bf16.mxu0 0
        %457 = vmatpush1.bf16.msra.mxu0 0
        %458 = vmatprep.subr.bf16.mxu0 0
        %459 = vmatpush1.bf16.msra.mxu0 0
        %460 = vmatprep.subr.bf16.mxu0 0
        %461 = vmatpush1.bf16.msra.mxu0 0
        %462 = vmatprep.subr.bf16.mxu0 0
        %463 = vmatpush1.bf16.msra.mxu0 0
        %464 = vmatprep.mubr.bf16.mxu0 0
        %465 = vmatmul.mubr.bf16.gmra.mrb[0].mxu0 %v430
        %v466 = vpop.f32.mrb[0].mxu0
        %v467 = vadd.f32 0.0, %v466
        %v468 = vpop.f32.mrb[0].mxu0
        %v469 = vpop.f32.mrb[0].mxu0
        %v470 = vpop.f32.mrb[0].mxu0
        %471 = vdwg.mxu0
        %v472 = vpack.c.bf16 %v467, %v467
        %474 = vrot.lane.b32.xlu0 %v472, 120
        %v475 = vpop.permute.xlu0 %474
        %476 = vrot.lane.b32.xlu0 %v472, 112
        %v477 = vpop.permute.xlu0 %476
        %478 = vrot.lane.b32.xlu0 %v472, 104
        %v479 = vpop.permute.xlu0 %478
        %480 = vrot.lane.b32.xlu0 %v472, 96
        %v481 = vpop.permute.xlu0 %480
        %vm482 = vcmask 64512
        %v484 = vsel %vm482, %v472, 0
        %v487 = vsel %vm482, %v481, 0
        %489 = vmatprep.subr.bf16.mxu0 0
        %490 = vmatpush1.bf16.xpose.msra.mxu0 %v487
        %491 = vmatprep.subr.bf16.mxu0 0
        %492 = vmatpush1.bf16.xpose.msra.mxu0 0
        %493 = vmatprep.subr.bf16.mxu0 0
        %494 = vmatpush1.bf16.xpose.msra.mxu0 0
        %495 = vmatprep.subr.bf16.mxu0 0
        %496 = vmatpush1.bf16.xpose.msra.mxu0 0
        %497 = vmatprep.subr.bf16.mxu0 0
        %498 = vmatpush1.bf16.xpose.msra.mxu0 0
        %499 = vmatprep.subr.bf16.mxu0 0
        %500 = vmatpush1.bf16.xpose.msra.mxu0 0
        %501 = vmatprep.subr.bf16.mxu0 0
        %502 = vmatpush1.bf16.xpose.msra.mxu0 0
        %503 = vmatprep.subr.bf16.mxu0 0
        %504 = vmatpush1.bf16.xpose.msra.mxu0 0
        %505 = vmatprep.subr.bf16.mxu0 0
        %506 = vmatpush1.bf16.xpose.msra.mxu0 0
        %507 = vmatprep.subr.bf16.mxu0 0
        %508 = vmatpush1.bf16.xpose.msra.mxu0 0
        %509 = vmatprep.subr.bf16.mxu0 0
        %510 = vmatpush1.bf16.xpose.msra.mxu0 0
        %511 = vmatprep.subr.bf16.mxu0 0
        %512 = vmatpush1.bf16.xpose.msra.mxu0 0
        %513 = vmatprep.subr.bf16.mxu0 0
        %514 = vmatpush1.bf16.xpose.msra.mxu0 0
        %515 = vmatprep.subr.bf16.mxu0 0
        %516 = vmatpush1.bf16.xpose.msra.mxu0 0
        %517 = vmatprep.subr.bf16.mxu0 0
        %518 = vmatpush1.bf16.xpose.msra.mxu0 0
        %519 = vmatprep.subr.bf16.mxu0 0
        %520 = vmatpush1.bf16.xpose.msra.mxu0 0
        %521 = vmatprep.mubr.bf16.mxu0 0
        %522 = vmatmul.mubr.bf16.gmra.mrb[0].mxu0 %v484
        %v523 = vpop.f32.mrb[0].mxu0
        %v524 = vadd.f32 0.0, %v523
        %v525 = vpop.f32.mrb[0].mxu0
        %v526 = vpop.f32.mrb[0].mxu0
        %v527 = vpop.f32.mrb[0].mxu0
        %528 = vdwg.mxu0
        %529 = vrot.lane.b32.xlu0 %v475, 96
        %v530 = vpop.permute.xlu0 %529
        %v532 = vsel %vm482, %v475, 0
        %v535 = vsel %vm482, %v530, 0
        %537 = vmatprep.subr.bf16.mxu0 0
        %538 = vmatpush1.bf16.xpose.msra.mxu0 %v535
        %539 = vmatprep.subr.bf16.mxu0 0
        %540 = vmatpush1.bf16.xpose.msra.mxu0 0
        %541 = vmatprep.subr.bf16.mxu0 0
        %542 = vmatpush1.bf16.xpose.msra.mxu0 0
        %543 = vmatprep.subr.bf16.mxu0 0
        %544 = vmatpush1.bf16.xpose.msra.mxu0 0
        %545 = vmatprep.subr.bf16.mxu0 0
        %546 = vmatpush1.bf16.xpose.msra.mxu0 0
        %547 = vmatprep.subr.bf16.mxu0 0
        %548 = vmatpush1.bf16.xpose.msra.mxu0 0
        %549 = vmatprep.subr.bf16.mxu0 0
        %550 = vmatpush1.bf16.xpose.msra.mxu0 0
        %551 = vmatprep.subr.bf16.mxu0 0
        %552 = vmatpush1.bf16.xpose.msra.mxu0 0
        %553 = vmatprep.subr.bf16.mxu0 0
        %554 = vmatpush1.bf16.xpose.msra.mxu0 0
        %555 = vmatprep.subr.bf16.mxu0 0
        %556 = vmatpush1.bf16.xpose.msra.mxu0 0
        %557 = vmatprep.subr.bf16.mxu0 0
        %558 = vmatpush1.bf16.xpose.msra.mxu0 0
        %559 = vmatprep.subr.bf16.mxu0 0
        %560 = vmatpush1.bf16.xpose.msra.mxu0 0
        %561 = vmatprep.subr.bf16.mxu0 0
        %562 = vmatpush1.bf16.xpose.msra.mxu0 0
        %563 = vmatprep.subr.bf16.mxu0 0
        %564 = vmatpush1.bf16.xpose.msra.mxu0 0
        %565 = vmatprep.subr.bf16.mxu0 0
        %566 = vmatpush1.bf16.xpose.msra.mxu0 0
        %567 = vmatprep.subr.bf16.mxu0 0
        %568 = vmatpush1.bf16.xpose.msra.mxu0 0
        %569 = vmatprep.mubr.bf16.mxu0 0
        %570 = vmatmul.mubr.bf16.gmra.mrb[0].mxu0 %v532
        %v571 = vpop.f32.mrb[0].mxu0
        %v572 = vadd.f32 0.0, %v571
        %v573 = vpop.f32.mrb[0].mxu0
        %v574 = vpop.f32.mrb[0].mxu0
        %v575 = vpop.f32.mrb[0].mxu0
        %576 = vdwg.mxu0
        %577 = vrot.lane.b32.xlu0 %v477, 96
        %v578 = vpop.permute.xlu0 %577
        %v580 = vsel %vm482, %v477, 0
        %v583 = vsel %vm482, %v578, 0
        %585 = vmatprep.subr.bf16.mxu0 0
        %586 = vmatpush1.bf16.xpose.msra.mxu0 %v583
        %587 = vmatprep.subr.bf16.mxu0 0
        %588 = vmatpush1.bf16.xpose.msra.mxu0 0
        %589 = vmatprep.subr.bf16.mxu0 0
        %590 = vmatpush1.bf16.xpose.msra.mxu0 0
        %591 = vmatprep.subr.bf16.mxu0 0
        %592 = vmatpush1.bf16.xpose.msra.mxu0 0
        %593 = vmatprep.subr.bf16.mxu0 0
        %594 = vmatpush1.bf16.xpose.msra.mxu0 0
        %595 = vmatprep.subr.bf16.mxu0 0
        %596 = vmatpush1.bf16.xpose.msra.mxu0 0
        %597 = vmatprep.subr.bf16.mxu0 0
        %598 = vmatpush1.bf16.xpose.msra.mxu0 0
        %599 = vmatprep.subr.bf16.mxu0 0
        %600 = vmatpush1.bf16.xpose.msra.mxu0 0
        %601 = vmatprep.subr.bf16.mxu0 0
        %602 = vmatpush1.bf16.xpose.msra.mxu0 0
        %603 = vmatprep.subr.bf16.mxu0 0
        %604 = vmatpush1.bf16.xpose.msra.mxu0 0
        %605 = vmatprep.subr.bf16.mxu0 0
        %606 = vmatpush1.bf16.xpose.msra.mxu0 0
        %607 = vmatprep.subr.bf16.mxu0 0
        %608 = vmatpush1.bf16.xpose.msra.mxu0 0
        %609 = vmatprep.subr.bf16.mxu0 0
        %610 = vmatpush1.bf16.xpose.msra.mxu0 0
        %611 = vmatprep.subr.bf16.mxu0 0
        %612 = vmatpush1.bf16.xpose.msra.mxu0 0
        %613 = vmatprep.subr.bf16.mxu0 0
        %614 = vmatpush1.bf16.xpose.msra.mxu0 0
        %615 = vmatprep.subr.bf16.mxu0 0
        %616 = vmatpush1.bf16.xpose.msra.mxu0 0
        %617 = vmatprep.mubr.bf16.mxu0 0
        %618 = vmatmul.mubr.bf16.gmra.mrb[0].mxu0 %v580
        %v619 = vpop.f32.mrb[0].mxu0
        %v620 = vadd.f32 0.0, %v619
        %v621 = vpop.f32.mrb[0].mxu0
        %v622 = vpop.f32.mrb[0].mxu0
        %v623 = vpop.f32.mrb[0].mxu0
        %624 = vdwg.mxu0
        %625 = vrot.lane.b32.xlu0 %v479, 96
        %v626 = vpop.permute.xlu0 %625
        %v628 = vsel %vm482, %v479, 0
        %v631 = vsel %vm482, %v626, 0
        %633 = vmatprep.subr.bf16.mxu0 0
        %634 = vmatpush1.bf16.xpose.msra.mxu0 %v631
        %635 = vmatprep.subr.bf16.mxu0 0
        %636 = vmatpush1.bf16.xpose.msra.mxu0 0
        %637 = vmatprep.subr.bf16.mxu0 0
        %638 = vmatpush1.bf16.xpose.msra.mxu0 0
        %639 = vmatprep.subr.bf16.mxu0 0
        %640 = vmatpush1.bf16.xpose.msra.mxu0 0
        %641 = vmatprep.subr.bf16.mxu0 0
        %642 = vmatpush1.bf16.xpose.msra.mxu0 0
        %643 = vmatprep.subr.bf16.mxu0 0
        %644 = vmatpush1.bf16.xpose.msra.mxu0 0
        %645 = vmatprep.subr.bf16.mxu0 0
        %646 = vmatpush1.bf16.xpose.msra.mxu0 0
        %647 = vmatprep.subr.bf16.mxu0 0
        %648 = vmatpush1.bf16.xpose.msra.mxu0 0
        %649 = vmatprep.subr.bf16.mxu0 0
        %650 = vmatpush1.bf16.xpose.msra.mxu0 0
        %651 = vmatprep.subr.bf16.mxu0 0
        %652 = vmatpush1.bf16.xpose.msra.mxu0 0
        %653 = vmatprep.subr.bf16.mxu0 0
        %654 = vmatpush1.bf16.xpose.msra.mxu0 0
        %655 = vmatprep.subr.bf16.mxu0 0
        %656 = vmatpush1.bf16.xpose.msra.mxu0 0
        %657 = vmatprep.subr.bf16.mxu0 0
        %658 = vmatpush1.bf16.xpose.msra.mxu0 0
        %659 = vmatprep.subr.bf16.mxu0 0
        %660 = vmatpush1.bf16.xpose.msra.mxu0 0
        %661 = vmatprep.subr.bf16.mxu0 0
        %662 = vmatpush1.bf16.xpose.msra.mxu0 0
        %663 = vmatprep.subr.bf16.mxu0 0
        %664 = vmatpush1.bf16.xpose.msra.mxu0 0
        %665 = vmatprep.mubr.bf16.mxu0 0
        %666 = vmatmul.mubr.bf16.gmra.mrb[0].mxu0 %v628
        %v667 = vpop.f32.mrb[0].mxu0
        %v668 = vadd.f32 0.0, %v667
        %v669 = vpop.f32.mrb[0].mxu0
        %v670 = vpop.f32.mrb[0].mxu0
        %v671 = vpop.f32.mrb[0].mxu0
        %672 = vdwg.mxu0
        %v673 = vsel %vm482, %v524, -inf
        %674 = vmax.xlane.f32.xlu0 %v673
        %v675 = vpop.xlane.xlu0 %674
        %v676 = vsel %vm482, %v572, -inf
        %677 = vmax.xlane.f32.xlu0 %v676
        %v678 = vpop.xlane.xlu0 %677
        %v679 = vsel %vm482, %v620, -inf
        %680 = vmax.xlane.f32.xlu0 %v679
        %v681 = vpop.xlane.xlu0 %680
        %v682 = vsel %vm482, %v668, -inf
        %683 = vmax.xlane.f32.xlu0 %v682
        %v684 = vpop.xlane.xlu0 %683
        %v685 = vsub.f32 %v524, %v675
        %v686 = vsub.f32 %v572, %v678
        %v687 = vsub.f32 %v620, %v681
        %v688 = vsub.f32 %v668, %v684
        %v689 = vmul.f32 %v685, 1.442695
        %v690 = vpow.pop %v689
        %v691 = vmul.f32 %v686, 1.442695
        %v692 = vpow.pop %v691
        %v693 = vmul.f32 %v687, 1.442695
        %v694 = vpow.pop %v693
        %v695 = vmul.f32 %v688, 1.442695
        %v696 = vpow.pop %v695
        %v697 = vsel %vm482, %v690, 0.0
        %698 = vadd.xlane.f32.xlu0 %v697
        %v699 = vpop.xlane.xlu0 %698
        %v700 = vsel %vm482, %v692, 0.0
        %701 = vadd.xlane.f32.xlu0 %v700
        %v702 = vpop.xlane.xlu0 %701
        %v703 = vsel %vm482, %v694, 0.0
        %704 = vadd.xlane.f32.xlu0 %v703
        %v705 = vpop.xlane.xlu0 %704
        %v706 = vsel %vm482, %v696, 0.0
        %707 = vadd.xlane.f32.xlu0 %v706
        %v708 = vpop.xlane.xlu0 %707
        %v709 = vpack.c.bf16 %v690, %v690
        %v710 = vpack.c.bf16 %v692, %v692
        %v711 = vpack.c.bf16 %v694, %v694
        %v712 = vpack.c.bf16 %v696, %v696
        %713 = vrot.lane.b32.xlu0 %v472, 64
        %v714 = vpop.permute.xlu0 %713
        %v716 = vsel %vm482, %v709, 0
        %vm718 = vcmask 1043456
        %v720 = vsel %vm718, %v714, 0
        %722 = vmatprep.subr.bf16.mxu0 0
        %723 = vmatpush1.bf16.msra.mxu0 %v720
        %724 = vmatprep.subr.bf16.mxu0 0
        %725 = vmatpush1.bf16.msra.mxu0 0
        %726 = vmatprep.subr.bf16.mxu0 0
        %727 = vmatpush1.bf16.msra.mxu0 0
        %728 = vmatprep.subr.bf16.mxu0 0
        %729 = vmatpush1.bf16.msra.mxu0 0
        %730 = vmatprep.subr.bf16.mxu0 0
        %731 = vmatpush1.bf16.msra.mxu0 0
        %732 = vmatprep.subr.bf16.mxu0 0
        %733 = vmatpush1.bf16.msra.mxu0 0
        %734 = vmatprep.subr.bf16.mxu0 0
        %735 = vmatpush1.bf16.msra.mxu0 0
        %736 = vmatprep.subr.bf16.mxu0 0
        %737 = vmatpush1.bf16.msra.mxu0 0
        %738 = vmatprep.subr.bf16.mxu0 0
        %739 = vmatpush1.bf16.msra.mxu0 0
        %740 = vmatprep.subr.bf16.mxu0 0
        %741 = vmatpush1.bf16.msra.mxu0 0
        %742 = vmatprep.subr.bf16.mxu0 0
        %743 = vmatpush1.bf16.msra.mxu0 0
        %744 = vmatprep.subr.bf16.mxu0 0
        %745 = vmatpush1.bf16.msra.mxu0 0
        %746 = vmatprep.subr.bf16.mxu0 0
        %747 = vmatpush1.bf16.msra.mxu0 0
        %748 = vmatprep.subr.bf16.mxu0 0
        %749 = vmatpush1.bf16.msra.mxu0 0
        %750 = vmatprep.subr.bf16.mxu0 0
        %751 = vmatpush1.bf16.msra.mxu0 0
        %752 = vmatprep.subr.bf16.mxu0 0
        %753 = vmatpush1.bf16.msra.mxu0 0
        %754 = vmatprep.mubr.bf16.mxu0 0
        %755 = vmatmul.mubr.bf16.gmra.mrb[0].mxu0 %v716
        %v756 = vpop.f32.mrb[0].mxu0
        %v757 = vadd.f32 0.0, %v756
        %v758 = vpop.f32.mrb[0].mxu0
        %v759 = vpop.f32.mrb[0].mxu0
        %v760 = vpop.f32.mrb[0].mxu0
        %761 = vdwg.mxu0
        %762 = vrot.lane.b32.xlu0 %v475, 64
        %v763 = vpop.permute.xlu0 %762
        %v765 = vsel %vm482, %v710, 0
        %v768 = vsel %vm718, %v763, 0
        %770 = vmatprep.subr.bf16.mxu0 0
        %771 = vmatpush1.bf16.msra.mxu0 %v768
        %772 = vmatprep.subr.bf16.mxu0 0
        %773 = vmatpush1.bf16.msra.mxu0 0
        %774 = vmatprep.subr.bf16.mxu0 0
        %775 = vmatpush1.bf16.msra.mxu0 0
        %776 = vmatprep.subr.bf16.mxu0 0
        %777 = vmatpush1.bf16.msra.mxu0 0
        %778 = vmatprep.subr.bf16.mxu0 0
        %779 = vmatpush1.bf16.msra.mxu0 0
        %780 = vmatprep.subr.bf16.mxu0 0
        %781 = vmatpush1.bf16.msra.mxu0 0
        %782 = vmatprep.subr.bf16.mxu0 0
        %783 = vmatpush1.bf16.msra.mxu0 0
        %784 = vmatprep.subr.bf16.mxu0 0
        %785 = vmatpush1.bf16.msra.mxu0 0
        %786 = vmatprep.subr.bf16.mxu0 0
        %787 = vmatpush1.bf16.msra.mxu0 0
        %788 = vmatprep.subr.bf16.mxu0 0
        %789 = vmatpush1.bf16.msra.mxu0 0
        %790 = vmatprep.subr.bf16.mxu0 0
        %791 = vmatpush1.bf16.msra.mxu0 0
        %792 = vmatprep.subr.bf16.mxu0 0
        %793 = vmatpush1.bf16.msra.mxu0 0
        %794 = vmatprep.subr.bf16.mxu0 0
        %795 = vmatpush1.bf16.msra.mxu0 0
        %796 = vmatprep.subr.bf16.mxu0 0
        %797 = vmatpush1.bf16.msra.mxu0 0
        %798 = vmatprep.subr.bf16.mxu0 0
        %799 = vmatpush1.bf16.msra.mxu0 0
        %800 = vmatprep.subr.bf16.mxu0 0
        %801 = vmatpush1.bf16.msra.mxu0 0
        %802 = vmatprep.mubr.bf16.mxu0 0
        %803 = vmatmul.mubr.bf16.gmra.mrb[0].mxu0 %v765
        %v804 = vpop.f32.mrb[0].mxu0
        %v805 = vadd.f32 0.0, %v804
        %v806 = vpop.f32.mrb[0].mxu0
        %v807 = vpop.f32.mrb[0].mxu0
        %v808 = vpop.f32.mrb[0].mxu0
        %809 = vdwg.mxu0
        %810 = vrot.lane.b32.xlu0 %v477, 64
        %v811 = vpop.permute.xlu0 %810
        %v813 = vsel %vm482, %v711, 0
        %v816 = vsel %vm718, %v811, 0
        %818 = vmatprep.subr.bf16.mxu0 0
        %819 = vmatpush1.bf16.msra.mxu0 %v816
        %820 = vmatprep.subr.bf16.mxu0 0
        %821 = vmatpush1.bf16.msra.mxu0 0
        %822 = vmatprep.subr.bf16.mxu0 0
        %823 = vmatpush1.bf16.msra.mxu0 0
        %824 = vmatprep.subr.bf16.mxu0 0
        %825 = vmatpush1.bf16.msra.mxu0 0
        %826 = vmatprep.subr.bf16.mxu0 0
        %827 = vmatpush1.bf16.msra.mxu0 0
        %828 = vmatprep.subr.bf16.mxu0 0
        %829 = vmatpush1.bf16.msra.mxu0 0
        %830 = vmatprep.subr.bf16.mxu0 0
        %831 = vmatpush1.bf16.msra.mxu0 0
        %832 = vmatprep.subr.bf16.mxu0 0
        %833 = vmatpush1.bf16.msra.mxu0 0
        %834 = vmatprep.subr.bf16.mxu0 0
        %835 = vmatpush1.bf16.msra.mxu0 0
        %836 = vmatprep.subr.bf16.mxu0 0
        %837 = vmatpush1.bf16.msra.mxu0 0
        %838 = vmatprep.subr.bf16.mxu0 0
        %839 = vmatpush1.bf16.msra.mxu0 0
        %840 = vmatprep.subr.bf16.mxu0 0
        %841 = vmatpush1.bf16.msra.mxu0 0
        %842 = vmatprep.subr.bf16.mxu0 0
        %843 = vmatpush1.bf16.msra.mxu0 0
        %844 = vmatprep.subr.bf16.mxu0 0
        %845 = vmatpush1.bf16.msra.mxu0 0
        %846 = vmatprep.subr.bf16.mxu0 0
        %847 = vmatpush1.bf16.msra.mxu0 0
        %848 = vmatprep.subr.bf16.mxu0 0
        %849 = vmatpush1.bf16.msra.mxu0 0
        %850 = vmatprep.mubr.bf16.mxu0 0
        %851 = vmatmul.mubr.bf16.gmra.mrb[0].mxu0 %v813
        %v852 = vpop.f32.mrb[0].mxu0
        %v853 = vadd.f32 0.0, %v852
        %v854 = vpop.f32.mrb[0].mxu0
        %v855 = vpop.f32.mrb[0].mxu0
        %v856 = vpop.f32.mrb[0].mxu0
        %857 = vdwg.mxu0
        %858 = vrot.lane.b32.xlu0 %v479, 64
        %v859 = vpop.permute.xlu0 %858
        %v861 = vsel %vm482, %v712, 0
        %v864 = vsel %vm718, %v859, 0
        %866 = vmatprep.subr.bf16.mxu0 0
        %867 = vmatpush1.bf16.msra.mxu0 %v864
        %868 = vmatprep.subr.bf16.mxu0 0
        %869 = vmatpush1.bf16.msra.mxu0 0
        %870 = vmatprep.subr.bf16.mxu0 0
        %871 = vmatpush1.bf16.msra.mxu0 0
        %872 = vmatprep.subr.bf16.mxu0 0
        %873 = vmatpush1.bf16.msra.mxu0 0
        %874 = vmatprep.subr.bf16.mxu0 0
        %875 = vmatpush1.bf16.msra.mxu0 0
        %876 = vmatprep.subr.bf16.mxu0 0
        %877 = vmatpush1.bf16.msra.mxu0 0
        %878 = vmatprep.subr.bf16.mxu0 0
        %879 = vmatpush1.bf16.msra.mxu0 0
        %880 = vmatprep.subr.bf16.mxu0 0
        %881 = vmatpush1.bf16.msra.mxu0 0
        %882 = vmatprep.subr.bf16.mxu0 0
        %883 = vmatpush1.bf16.msra.mxu0 0
        %884 = vmatprep.subr.bf16.mxu0 0
        %885 = vmatpush1.bf16.msra.mxu0 0
        %886 = vmatprep.subr.bf16.mxu0 0
        %887 = vmatpush1.bf16.msra.mxu0 0
        %888 = vmatprep.subr.bf16.mxu0 0
        %889 = vmatpush1.bf16.msra.mxu0 0
        %890 = vmatprep.subr.bf16.mxu0 0
        %891 = vmatpush1.bf16.msra.mxu0 0
        %892 = vmatprep.subr.bf16.mxu0 0
        %893 = vmatpush1.bf16.msra.mxu0 0
        %894 = vmatprep.subr.bf16.mxu0 0
        %895 = vmatpush1.bf16.msra.mxu0 0
        %896 = vmatprep.subr.bf16.mxu0 0
        %897 = vmatpush1.bf16.msra.mxu0 0
        %898 = vmatprep.mubr.bf16.mxu0 0
        %899 = vmatmul.mubr.bf16.gmra.mrb[0].mxu0 %v861
        %v900 = vpop.f32.mrb[0].mxu0
        %v901 = vadd.f32 0.0, %v900
        %v902 = vpop.f32.mrb[0].mxu0
        %v903 = vpop.f32.mrb[0].mxu0
        %v904 = vpop.f32.mrb[0].mxu0
        %905 = vdwg.mxu0
        %v906 = vrcp.pop %v699
        %v907 = vrcp.pop %v702
        %v908 = vrcp.pop %v705
        %v909 = vrcp.pop %v708
        %v910 = vmul.f32 %v757, %v906
        %v911 = vmul.f32 %v805, %v907
        %v912 = vmul.f32 %v853, %v908
        %v913 = vmul.f32 %v901, %v909
        %v914 = vpack.c.bf16 %v910, %v910
        %v915 = vpack.c.bf16 %v911, %v911
        %v916 = vpack.c.bf16 %v912, %v912
        %v917 = vpack.c.bf16 %v913, %v913
        %v918 = vld [vmem:[%s2] sm:$0xf]
        %v919 = vld [vmem:[%s2 + $0x4] sm:$0xf]
        %v920 = vld [vmem:[%s2 + $0x8] sm:$0xf]
        %v921 = vld [vmem:[%s2 + $0xc] sm:$0xf]
        %v923 = vsel %vm482, %v914, 0
        %v926 = vsel %vm718, %v918, 0
        %928 = vmatprep.subr.bf16.mxu0 0
        %929 = vmatpush1.bf16.msra.mxu0 %v926
        %930 = vmatprep.subr.bf16.mxu0 0
        %931 = vmatpush1.bf16.msra.mxu0 0
        %932 = vmatprep.subr.bf16.mxu0 0
        %933 = vmatpush1.bf16.msra.mxu0 0
        %934 = vmatprep.subr.bf16.mxu0 0
        %935 = vmatpush1.bf16.msra.mxu0 0
        %936 = vmatprep.subr.bf16.mxu0 0
        %937 = vmatpush1.bf16.msra.mxu0 0
        %938 = vmatprep.subr.bf16.mxu0 0
        %939 = vmatpush1.bf16.msra.mxu0 0
        %940 = vmatprep.subr.bf16.mxu0 0
        %941 = vmatpush1.bf16.msra.mxu0 0
        %942 = vmatprep.subr.bf16.mxu0 0
        %943 = vmatpush1.bf16.msra.mxu0 0
        %944 = vmatprep.subr.bf16.mxu0 0
        %945 = vmatpush1.bf16.msra.mxu0 0
        %946 = vmatprep.subr.bf16.mxu0 0
        %947 = vmatpush1.bf16.msra.mxu0 0
        %948 = vmatprep.subr.bf16.mxu0 0
        %949 = vmatpush1.bf16.msra.mxu0 0
        %950 = vmatprep.subr.bf16.mxu0 0
        %951 = vmatpush1.bf16.msra.mxu0 0
        %952 = vmatprep.subr.bf16.mxu0 0
        %953 = vmatpush1.bf16.msra.mxu0 0
        %954 = vmatprep.subr.bf16.mxu0 0
        %955 = vmatpush1.bf16.msra.mxu0 0
        %956 = vmatprep.subr.bf16.mxu0 0
        %957 = vmatpush1.bf16.msra.mxu0 0
        %958 = vmatprep.subr.bf16.mxu0 0
        %959 = vmatpush1.bf16.msra.mxu0 0
        %960 = vmatprep.mubr.bf16.mxu0 0
        %961 = vmatmul.mubr.bf16.gmra.mrb[0].mxu0 %v923
        %v962 = vpop.f32.mrb[0].mxu0
        %v963 = vadd.f32 0.0, %v962
        %v964 = vpop.f32.mrb[0].mxu0
        %v965 = vpop.f32.mrb[0].mxu0
        %v966 = vpop.f32.mrb[0].mxu0
        %967 = vdwg.mxu0
        %v969 = vsel %vm482, %v915, 0
        %v972 = vsel %vm718, %v919, 0
        %974 = vmatprep.subr.bf16.mxu0 0
        %975 = vmatpush1.bf16.msra.mxu0 %v972
        %976 = vmatprep.subr.bf16.mxu0 0
        %977 = vmatpush1.bf16.msra.mxu0 0
        %978 = vmatprep.subr.bf16.mxu0 0
        %979 = vmatpush1.bf16.msra.mxu0 0
        %980 = vmatprep.subr.bf16.mxu0 0
        %981 = vmatpush1.bf16.msra.mxu0 0
        %982 = vmatprep.subr.bf16.mxu0 0
        %983 = vmatpush1.bf16.msra.mxu0 0
        %984 = vmatprep.subr.bf16.mxu0 0
        %985 = vmatpush1.bf16.msra.mxu0 0
        %986 = vmatprep.subr.bf16.mxu0 0
        %987 = vmatpush1.bf16.msra.mxu0 0
        %988 = vmatprep.subr.bf16.mxu0 0
        %989 = vmatpush1.bf16.msra.mxu0 0
        %990 = vmatprep.subr.bf16.mxu0 0
        %991 = vmatpush1.bf16.msra.mxu0 0
        %992 = vmatprep.subr.bf16.mxu0 0
        %993 = vmatpush1.bf16.msra.mxu0 0
        %994 = vmatprep.subr.bf16.mxu0 0
        %995 = vmatpush1.bf16.msra.mxu0 0
        %996 = vmatprep.subr.bf16.mxu0 0
        %997 = vmatpush1.bf16.msra.mxu0 0
        %998 = vmatprep.subr.bf16.mxu0 0
        %999 = vmatpush1.bf16.msra.mxu0 0
        %1000 = vmatprep.subr.bf16.mxu0 0
        %1001 = vmatpush1.bf16.msra.mxu0 0
        %1002 = vmatprep.subr.bf16.mxu0 0
        %1003 = vmatpush1.bf16.msra.mxu0 0
        %1004 = vmatprep.subr.bf16.mxu0 0
        %1005 = vmatpush1.bf16.msra.mxu0 0
        %1006 = vmatprep.mubr.bf16.mxu0 0
        %1007 = vmatmul.mubr.bf16.gmra.mrb[0].mxu0 %v969
        %v1008 = vpop.f32.mrb[0].mxu0
        %v1009 = vadd.f32 0.0, %v1008
        %v1010 = vpop.f32.mrb[0].mxu0
        %v1011 = vpop.f32.mrb[0].mxu0
        %v1012 = vpop.f32.mrb[0].mxu0
        %1013 = vdwg.mxu0
        %v1015 = vsel %vm482, %v916, 0
        %v1018 = vsel %vm718, %v920, 0
        %1020 = vmatprep.subr.bf16.mxu0 0
        %1021 = vmatpush1.bf16.msra.mxu0 %v1018
        %1022 = vmatprep.subr.bf16.mxu0 0
        %1023 = vmatpush1.bf16.msra.mxu0 0
        %1024 = vmatprep.subr.bf16.mxu0 0
        %1025 = vmatpush1.bf16.msra.mxu0 0
        %1026 = vmatprep.subr.bf16.mxu0 0
        %1027 = vmatpush1.bf16.msra.mxu0 0
        %1028 = vmatprep.subr.bf16.mxu0 0
        %1029 = vmatpush1.bf16.msra.mxu0 0
        %1030 = vmatprep.subr.bf16.mxu0 0
        %1031 = vmatpush1.bf16.msra.mxu0 0
        %1032 = vmatprep.subr.bf16.mxu0 0
        %1033 = vmatpush1.bf16.msra.mxu0 0
        %1034 = vmatprep.subr.bf16.mxu0 0
        %1035 = vmatpush1.bf16.msra.mxu0 0
        %1036 = vmatprep.subr.bf16.mxu0 0
        %1037 = vmatpush1.bf16.msra.mxu0 0
        %1038 = vmatprep.subr.bf16.mxu0 0
        %1039 = vmatpush1.bf16.msra.mxu0 0
        %1040 = vmatprep.subr.bf16.mxu0 0
        %1041 = vmatpush1.bf16.msra.mxu0 0
        %1042 = vmatprep.subr.bf16.mxu0 0
        %1043 = vmatpush1.bf16.msra.mxu0 0
        %1044 = vmatprep.subr.bf16.mxu0 0
        %1045 = vmatpush1.bf16.msra.mxu0 0
        %1046 = vmatprep.subr.bf16.mxu0 0
        %1047 = vmatpush1.bf16.msra.mxu0 0
        %1048 = vmatprep.subr.bf16.mxu0 0
        %1049 = vmatpush1.bf16.msra.mxu0 0
        %1050 = vmatprep.subr.bf16.mxu0 0
        %1051 = vmatpush1.bf16.msra.mxu0 0
        %1052 = vmatprep.mubr.bf16.mxu0 0
        %1053 = vmatmul.mubr.bf16.gmra.mrb[0].mxu0 %v1015
        %v1054 = vpop.f32.mrb[0].mxu0
        %v1055 = vadd.f32 0.0, %v1054
        %v1056 = vpop.f32.mrb[0].mxu0
        %v1057 = vpop.f32.mrb[0].mxu0
        %v1058 = vpop.f32.mrb[0].mxu0
        %1059 = vdwg.mxu0
        %v1061 = vsel %vm482, %v917, 0
        %v1064 = vsel %vm718, %v921, 0
        %1066 = vmatprep.subr.bf16.mxu0 0
        %1067 = vmatpush1.bf16.msra.mxu0 %v1064
        %1068 = vmatprep.subr.bf16.mxu0 0
        %1069 = vmatpush1.bf16.msra.mxu0 0
        %1070 = vmatprep.subr.bf16.mxu0 0
        %1071 = vmatpush1.bf16.msra.mxu0 0
        %1072 = vmatprep.subr.bf16.mxu0 0
        %1073 = vmatpush1.bf16.msra.mxu0 0
        %1074 = vmatprep.subr.bf16.mxu0 0
        %1075 = vmatpush1.bf16.msra.mxu0 0
        %1076 = vmatprep.subr.bf16.mxu0 0
        %1077 = vmatpush1.bf16.msra.mxu0 0
        %1078 = vmatprep.subr.bf16.mxu0 0
        %1079 = vmatpush1.bf16.msra.mxu0 0
        %1080 = vmatprep.subr.bf16.mxu0 0
        %1081 = vmatpush1.bf16.msra.mxu0 0
        %1082 = vmatprep.subr.bf16.mxu0 0
        %1083 = vmatpush1.bf16.msra.mxu0 0
        %1084 = vmatprep.subr.bf16.mxu0 0
        %1085 = vmatpush1.bf16.msra.mxu0 0
        %1086 = vmatprep.subr.bf16.mxu0 0
        %1087 = vmatpush1.bf16.msra.mxu0 0
        %1088 = vmatprep.subr.bf16.mxu0 0
        %1089 = vmatpush1.bf16.msra.mxu0 0
        %1090 = vmatprep.subr.bf16.mxu0 0
        %1091 = vmatpush1.bf16.msra.mxu0 0
        %1092 = vmatprep.subr.bf16.mxu0 0
        %1093 = vmatpush1.bf16.msra.mxu0 0
        %1094 = vmatprep.subr.bf16.mxu0 0
        %1095 = vmatpush1.bf16.msra.mxu0 0
        %1096 = vmatprep.subr.bf16.mxu0 0
        %1097 = vmatpush1.bf16.msra.mxu0 0
        %1098 = vmatprep.mubr.bf16.mxu0 0
        %1099 = vmatmul.mubr.bf16.gmra.mrb[0].mxu0 %v1061
        %v1100 = vpop.f32.mrb[0].mxu0
        %v1101 = vadd.f32 0.0, %v1100
        %v1102 = vpop.f32.mrb[0].mxu0
        %v1103 = vpop.f32.mrb[0].mxu0
        %v1104 = vpop.f32.mrb[0].mxu0
        %1105 = vdwg.mxu0
        %v1106 = vsel %vm428, %v963, 0.0
        %v1107 = vsel %vm428, %v1009, 0.0
        %v1108 = vadd.f32 %v1106, %v1107
        %v1109 = vsel %vm428, %v1055, 0.0
        %v1110 = vadd.f32 %v1108, %v1109
        %v1111 = vsel %vm428, %v1101, 0.0
        %v1112 = vadd.f32 %v1110, %v1111
        %v1113 = vld [vmem:[%s3] sm:$0x1]
        %v1115 = vlaneseq
        %v1116 = vshrl.u32 %v1115, 7
        %v1117 = vsub.s32 0, %v1116
        %v1118 = vrot.slane %v1113, %v1117
        %v1120 = vadd.f32 %v1112, %v1118
        %v1121 = vadd.f32 %v1120, %v410
        %v1122 = vsel %vm428, %v1121, 0.0
        %1123 = vadd.xlane.f32.xlu0 %v1122
        %v1124 = vpop.xlane.xlu0 %1123
        %v1125 = vrcp.pop 32.0
        %v1126 = vmul.f32 %v1124, %v1125
        %v1127 = vsub.f32 %v1121, %v1126
        %v1128 = vmul.f32 %v1127, %v1127
        %v1129 = vsel %vm428, %v1128, 0.0
        %1130 = vadd.xlane.f32.xlu0 %v1129
        %v1131 = vpop.xlane.xlu0 %1130
        %v1132 = vmul.f32 %v1131, %v1125
        %v1133 = vadd.f32 %v1132, 1e-05
        %v1134 = vrsqrt.pop %v1133
        %v1135 = vmul.f32 %v1127, %v1134
        %v1136 = vld [vmem:[%s4] sm:$0x1]
        %v1138 = vlaneseq
        %v1139 = vshrl.u32 %v1138, 7
        %v1140 = vsub.s32 0, %v1139
        %v1141 = vrot.slane %v1136, %v1140
        %v1143 = vmul.f32 %v1135, %v1141
        %v1144 = vld [vmem:[%s5] sm:$0x1]
        %v1146 = vlaneseq
        %v1147 = vshrl.u32 %v1146, 7
        %v1148 = vsub.s32 0, %v1147
        %v1149 = vrot.slane %v1144, %v1148
        %v1151 = vadd.f32 %v1143, %v1149
        %v1152 = vpack.c.bf16 %v1151, %v1151
        %v1153 = vld [vmem:[%s6] sm:$0xf]
        %v1154 = vld [vmem:[%s6 + $0x4] sm:$0xf]
        %v1155 = vld [vmem:[%s6 + $0x8] sm:$0xf]
        %v1156 = vld [vmem:[%s6 + $0xc] sm:$0xf]
        %v1157 = vld [vmem:[%s7] sm:$0x1]
        %v1159 = vlaneseq
        %v1160 = vshrl.u32 %v1159, 7
        %v1161 = vsub.s32 0, %v1160
        %v1162 = vrot.slane %v1157, %v1161
        %v1168 = vunpack.c.l.b16 %v1153
        %v1169 = vunpack.c.l.b16 %v1154
        %v1170 = vunpack.c.l.b16 %v1155
        %v1171 = vunpack.c.l.b16 %v1156
        %v1172 = vpack.c.b16 %v1169, %v1168
        %v1173 = vpack.c.b16 %v1171, %v1170
        %v1177 = vsel %vm428, %v1152, 0
        %1179 = vmatprep.subr.bf16.mxu0 0
        %1180 = vmatpush1.bf16.msra.mxu0 %v1172
        %1181 = vmatprep.subr.bf16.mxu0 0
        %1182 = vmatpush1.bf16.msra.mxu0 %v1173
        %1183 = vmatprep.subr.bf16.mxu0 0
        %1184 = vmatpush1.bf16.msra.mxu0 0
        %1185 = vmatprep.subr.bf16.mxu0 0
        %1186 = vmatpush1.bf16.msra.mxu0 0
        %1187 = vmatprep.subr.bf16.mxu0 0
        %1188 = vmatpush1.bf16.msra.mxu0 0
        %1189 = vmatprep.subr.bf16.mxu0 0
        %1190 = vmatpush1.bf16.msra.mxu0 0
        %1191 = vmatprep.subr.bf16.mxu0 0
        %1192 = vmatpush1.bf16.msra.mxu0 0
        %1193 = vmatprep.subr.bf16.mxu0 0
        %1194 = vmatpush1.bf16.msra.mxu0 0
        %1195 = vmatprep.subr.bf16.mxu0 0
        %1196 = vmatpush1.bf16.msra.mxu0 0
        %1197 = vmatprep.subr.bf16.mxu0 0
        %1198 = vmatpush1.bf16.msra.mxu0 0
        %1199 = vmatprep.subr.bf16.mxu0 0
        %1200 = vmatpush1.bf16.msra.mxu0 0
        %1201 = vmatprep.subr.bf16.mxu0 0
        %1202 = vmatpush1.bf16.msra.mxu0 0
        %1203 = vmatprep.subr.bf16.mxu0 0
        %1204 = vmatpush1.bf16.msra.mxu0 0
        %1205 = vmatprep.subr.bf16.mxu0 0
        %1206 = vmatpush1.bf16.msra.mxu0 0
        %1207 = vmatprep.subr.bf16.mxu0 0
        %1208 = vmatpush1.bf16.msra.mxu0 0
        %1209 = vmatprep.subr.bf16.mxu0 0
        %1210 = vmatpush1.bf16.msra.mxu0 0
        %1211 = vmatprep.mubr.bf16.mxu0 0
        %1212 = vmatmul.mubr.bf16.gmra.mrb[0].mxu0 %v1177
        %v1213 = vpop.f32.mrb[0].mxu0
        %v1214 = vadd.f32 %v1162, %v1213
        %v1215 = vpop.f32.mrb[0].mxu0
        %v1216 = vpop.f32.mrb[0].mxu0
        %v1217 = vpop.f32.mrb[0].mxu0
        %1218 = vdwg.mxu0
        %v1219 = vmax.f32 %v1214, 0.0
        %v1220 = vpack.c.bf16 %v1219, %v1219
        %v1221 = vld [vmem:[%s8] sm:$0xf]
        %v1222 = vld [vmem:[%s8 + $0x4] sm:$0xf]
        %v1223 = vld [vmem:[%s8 + $0x8] sm:$0xf]
        %v1224 = vld [vmem:[%s8 + $0xc] sm:$0xf]
        %v1225 = vld [vmem:[%s8 + $0x10] sm:$0xf]
        %v1226 = vld [vmem:[%s8 + $0x14] sm:$0xf]
        %v1227 = vld [vmem:[%s8 + $0x18] sm:$0xf]
        %v1228 = vld [vmem:[%s8 + $0x1c] sm:$0xf]
        %v1229 = vld [vmem:[%s8 + $0x20] sm:$0xf]
        %v1230 = vld [vmem:[%s8 + $0x24] sm:$0xf]
        %v1231 = vld [vmem:[%s8 + $0x28] sm:$0xf]
        %v1232 = vld [vmem:[%s8 + $0x2c] sm:$0xf]
        %v1233 = vld [vmem:[%s8 + $0x30] sm:$0xf]
        %v1234 = vld [vmem:[%s8 + $0x34] sm:$0xf]
        %v1235 = vld [vmem:[%s8 + $0x38] sm:$0xf]
        %v1236 = vld [vmem:[%s8 + $0x3c] sm:$0xf]
        %v1237 = vld [vmem:[%s9] sm:$0x1]
        %v1239 = vlaneseq
        %v1240 = vshrl.u32 %v1239, 7
        %v1241 = vsub.s32 0, %v1240
        %v1242 = vrot.slane %v1237, %v1241
        %v1260 = vunpack.c.l.b16 %v1221
        %v1261 = vunpack.c.l.b16 %v1222
        %v1262 = vunpack.c.l.b16 %v1223
        %v1263 = vunpack.c.l.b16 %v1224
        %v1264 = vunpack.c.l.b16 %v1225
        %v1265 = vunpack.c.l.b16 %v1226
        %v1266 = vunpack.c.l.b16 %v1227
        %v1267 = vunpack.c.l.b16 %v1228
        %v1268 = vunpack.c.l.b16 %v1229
        %v1269 = vunpack.c.l.b16 %v1230
        %v1270 = vunpack.c.l.b16 %v1231
        %v1271 = vunpack.c.l.b16 %v1232
        %v1272 = vunpack.c.l.b16 %v1233
        %v1273 = vunpack.c.l.b16 %v1234
        %v1274 = vunpack.c.l.b16 %v1235
        %v1275 = vunpack.c.l.b16 %v1236
        %v1276 = vpack.c.b16 %v1261, %v1260
        %v1277 = vpack.c.b16 %v1263, %v1262
        %v1278 = vpack.c.b16 %v1265, %v1264
        %v1279 = vpack.c.b16 %v1267, %v1266
        %v1280 = vpack.c.b16 %v1269, %v1268
        %v1281 = vpack.c.b16 %v1271, %v1270
        %v1282 = vpack.c.b16 %v1273, %v1272
        %v1283 = vpack.c.b16 %v1275, %v1274
        %1292 = vmatprep.subr.bf16.mxu0 0
        %1293 = vmatpush1.bf16.msra.mxu0 %v1276
        %1294 = vmatprep.subr.bf16.mxu0 0
        %1295 = vmatpush1.bf16.msra.mxu0 %v1277
        %1296 = vmatprep.subr.bf16.mxu0 0
        %1297 = vmatpush1.bf16.msra.mxu0 %v1278
        %1298 = vmatprep.subr.bf16.mxu0 0
        %1299 = vmatpush1.bf16.msra.mxu0 %v1279
        %1300 = vmatprep.subr.bf16.mxu0 0
        %1301 = vmatpush1.bf16.msra.mxu0 %v1280
        %1302 = vmatprep.subr.bf16.mxu0 0
        %1303 = vmatpush1.bf16.msra.mxu0 %v1281
        %1304 = vmatprep.subr.bf16.mxu0 0
        %1305 = vmatpush1.bf16.msra.mxu0 %v1282
        %1306 = vmatprep.subr.bf16.mxu0 0
        %1307 = vmatpush1.bf16.msra.mxu0 %v1283
        %1308 = vmatprep.subr.bf16.mxu0 0
        %1309 = vmatpush1.bf16.msra.mxu0 0
        %1310 = vmatprep.subr.bf16.mxu0 0
        %1311 = vmatpush1.bf16.msra.mxu0 0
        %1312 = vmatprep.subr.bf16.mxu0 0
        %1313 = vmatpush1.bf16.msra.mxu0 0
        %1314 = vmatprep.subr.bf16.mxu0 0
        %1315 = vmatpush1.bf16.msra.mxu0 0
        %1316 = vmatprep.subr.bf16.mxu0 0
        %1317 = vmatpush1.bf16.msra.mxu0 0
        %1318 = vmatprep.subr.bf16.mxu0 0
        %1319 = vmatpush1.bf16.msra.mxu0 0
        %1320 = vmatprep.subr.bf16.mxu0 0
        %1321 = vmatpush1.bf16.msra.mxu0 0
        %1322 = vmatprep.subr.bf16.mxu0 0
        %1323 = vmatpush1.bf16.msra.mxu0 0
        %1324 = vmatprep.mubr.bf16.mxu0 0
        %1325 = vmatmul.mubr.bf16.gmra.mrb[0].mxu0 %v1220
        %v1326 = vpop.f32.mrb[0].mxu0
        %v1327 = vadd.f32 %v1242, %v1326
        %v1328 = vpop.f32.mrb[0].mxu0
        %v1329 = vpop.f32.mrb[0].mxu0
        %v1330 = vpop.f32.mrb[0].mxu0
        %1331 = vdwg.mxu0
        %v1332 = vadd.f32 %v1327, %v1151
        %v1333 = vsel %vm428, %v1332, 0.0
        %1334 = vadd.xlane.f32.xlu0 %v1333
        %v1335 = vpop.xlane.xlu0 %1334
        %v1336 = vmul.f32 %v1335, %v1125
        %v1337 = vsub.f32 %v1332, %v1336
        %v1338 = vmul.f32 %v1337, %v1337
        %v1339 = vsel %vm428, %v1338, 0.0
        %1340 = vadd.xlane.f32.xlu0 %v1339
        %v1341 = vpop.xlane.xlu0 %1340
        %v1342 = vmul.f32 %v1341, %v1125
        %v1343 = vadd.f32 %v1342, 1e-05
        %v1344 = vrsqrt.pop %v1343
        %v1345 = vmul.f32 %v1337, %v1344
        %v1346 = vld [vmem:[%s10] sm:$0x1]
        %v1348 = vlaneseq
        %v1349 = vshrl.u32 %v1348, 7
        %v1350 = vsub.s32 0, %v1349
        %v1351 = vrot.slane %v1346, %v1350
        %v1353 = vmul.f32 %v1345, %v1351
        %v1354 = vld [vmem:[%s11] sm:$0x1]
        %v1356 = vlaneseq
        %v1357 = vshrl.u32 %v1356, 7
        %v1358 = vsub.s32 0, %v1357
        %v1359 = vrot.slane %v1354, %v1358
        %v1361 = vadd.f32 %v1353, %v1359
        %1362 = vst.msk [vmem:[%s404] sm:$0xff] %vm428, %v1361
        %s1363 = sand.u32 %s291, 1
        %s1364 = scalar_lea.sflag [#allocation3], %s1363
        %s1365 = sand.u32 %s291, 1
        %s1366 = smul.addr %s1365, 8
        %s1367 = scalar_lea.vmem [#allocation2], %s1366
        // Predicated region
        $region69: #{tpu_custom_call.1} parent=67 // pred_check
          %p1368 = pneg %p301
        $region70: #{tpu_custom_call.1} parent=67 // pred_check_branch
          %1370 = sbr.rel (%p1368) target = $region72
        $region71: #{tpu_custom_call.1} parent=67 // pred_region
          %s1372 = ssub.s32 128, 128
          %1373 = vsyncadd %s1364, %s1372
          %s1374 = smul.addr %s26, 128
          %s1375 = scalar_lea.hbm %s12, %s1374
          %s1377 = sshll.u32 %s1367, 4
          %s1378 = int_to_ptr.vmem [resolvable:$true] %s1377
          %1380 = dma.vmem_to_hbm [thread:$0]  %s1378, 128, %s1375, %s1364
        $region72: #{tpu_custom_call.1} parent=67 // pred_fallthru
          _
      $region68: #{tpu_custom_call.1} parent=5 // pred_fallthru
        _
      %p1381 = scmp.le.s32.totalorder 2, %s21
      // Predicated region
      $region73: #{tpu_custom_call.1} parent=5 // pred_check
        %p1382 = pneg %p1381
      $region74: #{tpu_custom_call.1} parent=5 // pred_check_branch
        %1384 = sbr.rel (%p1382) target = $region76
      $region75: #{tpu_custom_call.1} parent=5 // pred_region
        %s1385 = ssub.s32 %s21, 2
        // Predicated region
        $region77: #{tpu_custom_call.1} parent=75 // pred_check
          %p1386 = pneg %p307
        $region78: #{tpu_custom_call.1} parent=75 // pred_check_branch
          %1388 = sbr.rel (%p1386) target = $region80
        $region79: #{tpu_custom_call.1} parent=75 // pred_region
          %s1389 = sand.u32 %s292, 1
          %s1390 = scalar_lea.sflag [#allocation3], %s1389
          %s1391 = sand.u32 %s292, 1
          %s1392 = smul.addr %s1391, 8
          %s1393 = scalar_lea.vmem [#allocation2], %s1392
          %1394 = dma.done %s1390, 128
        $region80: #{tpu_custom_call.1} parent=75 // pred_fallthru
          _
      $region76: #{tpu_custom_call.1} parent=5 // pred_fallthru
        _
    $region6: #{tpu_custom_call.1} parent=1 // loop_footer
      %s25 = sadd.s32 1, %s21
    $region7: #{tpu_custom_call.1} parent=1 // loop_footer_branch
      %20 = sbr.rel target = $region3
    $region8: #{tpu_custom_call.1} parent=1 // loop_exit
      _
    %1395 = vsyncpa [#allocation3], 1
    %s1396 = scalar_lea.sflag [#allocation3], 1
    %1397 = vsyncpa %s1396, 1

</llo_original>
